<compile_context>
chip_gen: v7x
topology: tpu7x:2x2x1
jax: 0.10.0
libtpu: 0.0.40
codegen_flags: <defaults>
</compile_context>

<pallas_src>
import functools
import math
from typing import NamedTuple, Tuple

import jax
import jax.numpy as jnp
from jax.experimental import pallas as pl
from jax.experimental.pallas import tpu as pltpu

BN_EPS = 1e-5


def _round_up(x, m):
    return (x + m - 1) // m * m


def _vmem_limit_bytes():
    cap = 128 * 1024 * 1024
    try:
        info = pltpu.get_tpu_info()
        cap = int(getattr(info, "vmem_capacity_bytes", cap))
    except Exception:
        pass
    return min(100 * 1024 * 1024, (cap * 3) // 4)


class _Cfg(NamedTuple):
    expand: bool
    residual: bool
    stride: int
    TR: int          # output rows per tile
    TIN: int         # input rows held per tile (incl. halo)
    Wp: int          # W + 2 (original padded width, before lane-friendly width pad)
    Wpad: int        # padded-width of the tile buffer
    Wout: int        # output columns
    nt: int          # number of row tiles
    ro: Tuple[int, int, int]   # row offset of tap kh inside the tile buffer
    co: Tuple[int, int, int]   # col offset of tap kw inside the tile buffer


# ----------------------------------------------------------------------------
# Fused kernel: pw1(1x1)+BN+ReLU6 -> dw(3x3)+BN+ReLU6 -> pw2(1x1)+BN (+residual)
# ----------------------------------------------------------------------------
def _inv_res_kernel(*refs, cfg: _Cfg):
    it = iter(refs)
    xt_ref = next(it)
    if cfg.expand:
        w1_ref, s1_ref, b1_ref = next(it), next(it), next(it)
    wd_ref, sd_ref, bd_ref = next(it), next(it), next(it)
    w2_ref, s2_ref, b2_ref = next(it), next(it), next(it)
    r_ref = next(it) if cfg.residual else None
    o_ref = next(it)
    hid_ref = next(it)                     # VMEM scratch: (TIN, Wpad, Ch_p) bf16

    TR, TIN, Wpad, Wout = cfg.TR, cfg.TIN, cfg.Wpad, cfg.Wout
    chp = hid_ref.shape[-1]
    j = pl.program_id(1)

    # ---- 1x1 expansion (bf16 MXU, f32 accumulate, f32 epilogue); hidden stays in VMEM
    if cfg.expand:
        x2 = xt_ref[...].reshape(TIN * Wpad, xt_ref.shape[-1])
        h1 = jnp.dot(x2, w1_ref[...], preferred_element_type=jnp.float32)
        h1 = jnp.clip(h1 * s1_ref[...] + b1_ref[...], 0.0, 6.0)
        hid_ref[...] = h1.reshape(TIN, Wpad, chp).astype(hid_ref.dtype)
    else:
        hid_ref[...] = xt_ref[...]

    # ---- the depthwise conv must see ZERO padding of the *hidden* tensor
    # (pw1 of a zero-padded input would give relu6(shift) != 0), so explicitly
    # zero the hidden rows/cols that correspond to spatial padding.
    zero_col = jnp.zeros((TIN, 1, chp), hid_ref.dtype)
    hid_ref[:, 0:1, :] = zero_col
    hid_ref[:, cfg.Wp - 1:cfg.Wp, :] = zero_col
    zero_row = jnp.zeros((1, Wpad, chp), hid_ref.dtype)

    @pl.when(j == 0)
    def _():
        hid_ref[0:1, :, :] = zero_row      # top padding row (both strides)

    if cfg.stride == 1:                    # bottom padding row only used for stride 1
        @pl.when(j == cfg.nt - 1)
        def _():
            hid_ref[TIN - 1:TIN, :, :] = zero_row

    # ---- depthwise 3x3 + BN + ReLU6 (stride folded into the static tap offsets)
    wd = wd_ref[...]                       # (9, chp) f32
    acc = jnp.zeros((TR, Wout, chp), jnp.float32)
    for kh in range(3):
        # load one row strip per kh and reuse it for all three kw taps
        rows = hid_ref[cfg.ro[kh]:cfg.ro[kh] + TR, :, :]
        for kw in range(3):
            k = 3 * kh + kw
            acc = acc + rows[:, cfg.co[kw]:cfg.co[kw] + Wout, :] * wd[k:k + 1, :]
    h2 = jnp.clip(acc * sd_ref[...] + bd_ref[...], 0.0, 6.0)

    # ---- 1x1 projection + BN (+ residual in f32), lane-dense (channel-padded) store
    y = jnp.dot(h2.reshape(TR * Wout, chp).astype(jnp.bfloat16), w2_ref[...],
                preferred_element_type=jnp.float32)
    y = y * s2_ref[...] + b2_ref[...]
    if cfg.residual:
        y = y + r_ref[...].reshape(TR * Wout, y.shape[-1])
    o_ref[...] = y.reshape(TR, Wout, y.shape[-1]).astype(o_ref.dtype)


def _pad2(a, rows, cols):
    return jnp.pad(a, ((0, rows - a.shape[0]), (0, cols - a.shape[1])))


# ----------------------------------------------------------------------------
# Wrapper: NCHW in/out, builds halo'd row tiles + channel padding, calls the kernel
# ----------------------------------------------------------------------------
def inverted_residual_forward(x_nchw, params, *, stride, expand_ratio, row_tile=32):
    assert stride in (1, 2)
    N, Cin, H, W = x_nchw.shape
    if stride == 2:
        assert H % 2 == 0 and W % 2 == 0
    hidden = params["dw_w"].shape[-1]
    oup = params["pw2_w"].shape[-1]
    expand = expand_ratio != 1
    assert expand == ("pw1_w" in params)
    use_res = (stride == 1 and Cin == oup)

    Ho, Wo = H // stride, W // stride
    # row tile: largest divisor of Ho not larger than row_tile
    TR = min(row_tile, Ho)
    while Ho % TR:
        TR -= 1
    nt = Ho // TR

    Cin_p = _round_up(Cin, 128)
    Ch_p = _round_up(hidden, 128)
    Co_p = _round_up(oup, 128)

    x = jnp.transpose(x_nchw, (0, 2, 3, 1)).astype(jnp.float32)        # NHWC, f32
    # spatially zero-pad, channel-pad, cast to bf16 for the MXU
    xq = jnp.pad(x, ((0, 0), (1, 1), (1, 1), (0, Cin_p - Cin))).astype(jnp.bfloat16)

    Wp = W + 2
    Wpad = _round_up(Wp, 16)               # bf16 sublane-friendly width

    if stride == 1:
        TIN = TR + 2
        tiles = [xq[:, j * TR:j * TR + TIN] for j in range(nt)]
        ro, co, Wout = (0, 1, 2), (0, 1, 2), W
    else:
        # de-interleave columns: [even | odd] so that stride-2 taps become contiguous
        xq = jnp.concatenate([xq[:, :, 0::2, :], xq[:, :, 1::2, :]], axis=2)
        TIN = 2 * TR + 1
        tiles = []
        for j in range(nt):
            blk = xq[:, 2 * j * TR:2 * j * TR + TIN]
            # de-interleave rows: [even | odd]
            tiles.append(jnp.concatenate([blk[:, 0::2], blk[:, 1::2]], axis=1))
        ro, co, Wout = (0, TR + 1, 1), (0, Wo + 1, 1), Wo

    xt = jnp.stack(tiles, axis=1)                                   # (N, nt, TIN, Wp, Cin_p)
    xt = jnp.pad(xt, ((0, 0), (0, 0), (0, 0), (0, Wpad - Wp), (0, 0)))
    xt = xt.reshape(N * nt, TIN, Wpad, Cin_p)

    inputs = [xt]
    in_specs = [pl.BlockSpec((None, TIN, Wpad, Cin_p),
                             lambda n, j: (n * nt + j, 0, 0, 0))]
    if expand:
        w1 = _pad2(params["pw1_w"], Cin_p, Ch_p).astype(jnp.bfloat16)
        s1 = _pad2(params["pw1_scale"].reshape(1, -1), 1, Ch_p).astype(jnp.float32)
        b1 = _pad2(params["pw1_shift"].reshape(1, -1), 1, Ch_p).astype(jnp.float32)
        inputs += [w1, s1, b1]
        in_specs += [pl.BlockSpec((Cin_p, Ch_p), lambda n, j: (0, 0)),
                     pl.BlockSpec((1, Ch_p), lambda n, j: (0, 0)),
                     pl.BlockSpec((1, Ch_p), lambda n, j: (0, 0))]

    wd = _pad2(params["dw_w"].reshape(9, hidden), 9, Ch_p).astype(jnp.float32)
    sd = _pad2(params["dw_scale"].reshape(1, -1), 1, Ch_p).astype(jnp.float32)
    bd = _pad2(params["dw_shift"].reshape(1, -1), 1, Ch_p).astype(jnp.float32)
    w2 = _pad2(params["pw2_w"], Ch_p, Co_p).astype(jnp.bfloat16)
    s2 = _pad2(params["pw2_scale"].reshape(1, -1), 1, Co_p).astype(jnp.float32)
    b2 = _pad2(params["pw2_shift"].reshape(1, -1), 1, Co_p).astype(jnp.float32)
    inputs += [wd, sd, bd, w2, s2, b2]
    in_specs += [pl.BlockSpec((9, Ch_p), lambda n, j: (0, 0)),
                 pl.BlockSpec((1, Ch_p), lambda n, j: (0, 0)),
                 pl.BlockSpec((1, Ch_p), lambda n, j: (0, 0)),
                 pl.BlockSpec((Ch_p, Co_p), lambda n, j: (0, 0)),
                 pl.BlockSpec((1, Co_p), lambda n, j: (0, 0)),
                 pl.BlockSpec((1, Co_p), lambda n, j: (0, 0))]
    if use_res:
        res = jnp.pad(x, ((0, 0), (0, 0), (0, 0), (0, Co_p - Cin)))  # f32 residual
        inputs.append(res)
        in_specs.append(pl.BlockSpec((None, TR, W, Co_p), lambda n, j: (n, j, 0, 0)))

    cfg = _Cfg(expand=expand, residual=use_res, stride=stride, TR=TR, TIN=TIN,
               Wp=Wp, Wpad=Wpad, Wout=Wout, nt=nt, ro=ro, co=co)

    out = pl.pallas_call(
        functools.partial(_inv_res_kernel, cfg=cfg),
        out_shape=jax.ShapeDtypeStruct((N, Ho, Wout, Co_p), jnp.float32),
        grid=(N, nt),
        in_specs=in_specs,
        out_specs=pl.BlockSpec((None, TR, Wout, Co_p), lambda n, j: (n, j, 0, 0)),
        scratch_shapes=[pltpu.VMEM((TIN, Wpad, Ch_p), jnp.bfloat16)],
        compiler_params=pltpu.CompilerParams(
            dimension_semantics=("parallel", "parallel"),
            vmem_limit_bytes=_vmem_limit_bytes()),
    )(*inputs)

    y = out[:, :, :, :oup]
    return jnp.transpose(y, (0, 3, 1, 2))                           # back to NCHW


# ----------------------------------------------------------------------------
# Deterministic parameter init (BN folded to per-channel scale/shift)
# ----------------------------------------------------------------------------
def init_params(key, inp, oup, expand_ratio):
    hidden = int(inp * expand_ratio)
    ks = jax.random.split(key, 6)

    def bn(k, c):
        kg, kb = jax.random.split(k)
        gamma = 1.0 + 0.2 * jax.random.normal(kg, (c,), jnp.float32)
        beta = 0.5 * jax.random.normal(kb, (c,), jnp.float32)
        scale = gamma / jnp.sqrt(1.0 + BN_EPS)     # running_mean=0, running_var=1
        shift = beta
        return scale, shift

    p = {}
    if expand_ratio != 1:
        p["pw1_w"] = math.sqrt(2.0 / hidden) * jax.random.normal(ks[0], (inp, hidden), jnp.float32)
        p["pw1_scale"], p["pw1_shift"] = bn(ks[1], hidden)
    p["dw_w"] = math.sqrt(2.0 / (9 * hidden)) * jax.random.normal(ks[2], (3, 3, hidden), jnp.float32)
    p["dw_scale"], p["dw_shift"] = bn(ks[3], hidden)
    p["pw2_w"] = math.sqrt(2.0 / oup) * jax.random.normal(ks[4], (hidden, oup), jnp.float32)
    p["pw2_scale"], p["pw2_shift"] = bn(ks[5], oup)
    return p


# ----------------------------------------------------------------------------
# Pure-JAX reference (quantization-aware: mirrors the kernel's bf16 cast points)
# ----------------------------------------------------------------------------
def inverted_residual_ref(x_nchw, params, stride, expand_ratio):
    f32 = jnp.float32
    hp_prec = jax.lax.Precision.HIGHEST
    x = jnp.transpose(x_nchw, (0, 2, 3, 1)).astype(f32)
    xq = x.astype(jnp.bfloat16).astype(f32)

    if expand_ratio != 1:
        w1 = params["pw1_w"].astype(jnp.bfloat16).astype(f32)
        h = jnp.einsum("nhwc,cd->nhwd", xq, w1, precision=hp_prec)
        h = jnp.clip(h * params["pw1_scale"] + params["pw1_shift"], 0.0, 6.0)
        h = h.astype(jnp.bfloat16).astype(f32)
    else:
        h = xq

    hp = jnp.pad(h, ((0, 0), (1, 1), (1, 1), (0, 0)))
    Ho, Wo = h.shape[1] // stride, h.shape[2] // stride
    acc = jnp.zeros((h.shape[0], Ho, Wo, h.shape[-1]), f32)
    wd = params["dw_w"]
    for kh in range(3):
        for kw in range(3):
            acc = acc + hp[:, kh:kh + stride * (Ho - 1) + 1:stride,
                           kw:kw + stride * (Wo - 1) + 1:stride, :] * wd[kh, kw]
    h2 = jnp.clip(acc * params["dw_scale"] + params["dw_shift"], 0.0, 6.0)
    h2 = h2.astype(jnp.bfloat16).astype(f32)

    w2 = params["pw2_w"].astype(jnp.bfloat16).astype(f32)
    y = jnp.einsum("nhwc,cd->nhwd", h2, w2, precision=hp_prec)
    y = y * params["pw2_scale"] + params["pw2_shift"]
    if stride == 1 and x.shape[-1] == y.shape[-1]:
        y = y + x
    return jnp.transpose(y, (0, 3, 1, 2))


if __name__ == "__main__":
    key = jax.random.PRNGKey(0)
    k_x, k_p = jax.random.split(key)
    N, Cin, H, W = 2, 32, 16, 16
    x = jax.random.normal(k_x, (N, Cin, H, W), jnp.float32)

    configs = [
        dict(inp=32, oup=32, stride=1, expand_ratio=6),   # expand + residual
        dict(inp=32, oup=64, stride=2, expand_ratio=6),   # expand, stride-2 in-kernel
        dict(inp=32, oup=48, stride=1, expand_ratio=1),   # no expand, no residual
    ]

    fwd = jax.jit(inverted_residual_forward,
                  static_argnames=("stride", "expand_ratio", "row_tile"))

    for i, c in enumerate(configs):
        params = init_params(jax.random.fold_in(k_p, i), c["inp"], c["oup"], c["expand_ratio"])
        out = fwd(x, params, stride=c["stride"], expand_ratio=c["expand_ratio"], row_tile=4)
        out = jax.block_until_ready(out)
        ref = inverted_residual_ref(x, params, c["stride"], c["expand_ratio"])
        assert out.shape == ref.shape, (out.shape, ref.shape)
        assert bool(jnp.all(jnp.isfinite(out)))
        err = float(jnp.max(jnp.abs(out - ref)))
        assert err < 5e-2, (i, err)

    print("KERNEL_OK")
</pallas_src>

<mosaic_0001>
module attributes {stable_mosaic.version = 11 : i64} {
  func.func @_inv_res_kernel(%arg0: i32, %arg1: i32, %arg2: memref<1x6x32x128xbf16, #tpu.memory_space<vmem>>, %arg3: memref<128x256xbf16, #tpu.memory_space<vmem>>, %arg4: memref<1x256xf32, #tpu.memory_space<vmem>>, %arg5: memref<1x256xf32, #tpu.memory_space<vmem>>, %arg6: memref<9x256xf32, #tpu.memory_space<vmem>>, %arg7: memref<1x256xf32, #tpu.memory_space<vmem>>, %arg8: memref<1x256xf32, #tpu.memory_space<vmem>>, %arg9: memref<256x128xbf16, #tpu.memory_space<vmem>>, %arg10: memref<1x128xf32, #tpu.memory_space<vmem>>, %arg11: memref<1x128xf32, #tpu.memory_space<vmem>>, %arg12: memref<1x4x16x128xf32, #tpu.memory_space<vmem>>, %arg13: memref<1x4x16x128xf32, #tpu.memory_space<vmem>>, %arg14: memref<6x32x256xbf16, #tpu.memory_space<vmem>>) attributes {dimension_semantics = [#tpu.dimension_semantics<parallel>, #tpu.dimension_semantics<parallel>], iteration_bounds = array<i64: 2, 4>, scalar_prefetch = 0 : i64, scratch_operands = 1 : i64, tpu.core_type = #tpu.core_type<tc>, window_params = [{transform_indices = @transform_0, window_bounds = array<i64: 1, 6, 32, 128>}, {pipeline_mode = #tpu.pipeline_mode<synchronous>, transform_indices = @transform_1, window_bounds = array<i64: 128, 256>}, {pipeline_mode = #tpu.pipeline_mode<synchronous>, transform_indices = @transform_2, window_bounds = array<i64: 1, 256>}, {pipeline_mode = #tpu.pipeline_mode<synchronous>, transform_indices = @transform_3, window_bounds = array<i64: 1, 256>}, {pipeline_mode = #tpu.pipeline_mode<synchronous>, transform_indices = @transform_4, window_bounds = array<i64: 9, 256>}, {pipeline_mode = #tpu.pipeline_mode<synchronous>, transform_indices = @transform_5, window_bounds = array<i64: 1, 256>}, {pipeline_mode = #tpu.pipeline_mode<synchronous>, transform_indices = @transform_6, window_bounds = array<i64: 1, 256>}, {pipeline_mode = #tpu.pipeline_mode<synchronous>, transform_indices = @transform_7, window_bounds = array<i64: 256, 128>}, {pipeline_mode = #tpu.pipeline_mode<synchronous>, transform_indices = @transform_8, window_bounds = array<i64: 1, 128>}, {pipeline_mode = #tpu.pipeline_mode<synchronous>, transform_indices = @transform_9, window_bounds = array<i64: 1, 128>}, {transform_indices = @transform_10, window_bounds = array<i64: 1, 4, 16, 128>}, {transform_indices = @transform_11, window_bounds = array<i64: 1, 4, 16, 128>}]} {
    %c0 = arith.constant 0 : index
    %c0_0 = arith.constant 0 : index
    %c0_1 = arith.constant 0 : index
    %c0_2 = arith.constant 0 : index
    %0 = vector.load %arg2[%c0, %c0_0, %c0_1, %c0_2] : memref<1x6x32x128xbf16, #tpu.memory_space<vmem>>, vector<1x6x32x128xbf16>
    %1 = vector.shape_cast %0 : vector<1x6x32x128xbf16> to vector<6x32x128xbf16>
    %2 = vector.shape_cast %1 : vector<6x32x128xbf16> to vector<192x128xbf16>
    %c0_3 = arith.constant 0 : index
    %c0_4 = arith.constant 0 : index
    %3 = vector.load %arg3[%c0_3, %c0_4] : memref<128x256xbf16, #tpu.memory_space<vmem>>, vector<128x256xbf16>
    %cst = arith.constant dense<0.000000e+00> : vector<192x256xf32>
    %4 = tpu.matmul %2, %3, %cst {dimension_numbers = #tpu.dot_dimension_numbers<[1], [0], [0], [1], [0, 0, 1, 1], [], []>} : vector<192x128xbf16>, vector<128x256xbf16>, vector<192x256xf32> -> vector<192x256xf32>
    %c0_5 = arith.constant 0 : index
    %c0_6 = arith.constant 0 : index
    %5 = vector.load %arg4[%c0_5, %c0_6] : memref<1x256xf32, #tpu.memory_space<vmem>>, vector<1x256xf32>
    %6 = vector.broadcast %5 : vector<1x256xf32> to vector<192x256xf32>
    %7 = arith.mulf %4, %6 : vector<192x256xf32>
    %c0_7 = arith.constant 0 : index
    %c0_8 = arith.constant 0 : index
    %8 = vector.load %arg5[%c0_7, %c0_8] : memref<1x256xf32, #tpu.memory_space<vmem>>, vector<1x256xf32>
    %9 = vector.broadcast %8 : vector<1x256xf32> to vector<192x256xf32>
    %10 = arith.addf %7, %9 : vector<192x256xf32>
    %cst_9 = arith.constant 0.000000e+00 : f32
    %cst_10 = arith.constant 6.000000e+00 : f32
    %11 = vector.broadcast %cst_9 : f32 to vector<192x256xf32>
    %12 = arith.maximumf %11, %10 : vector<192x256xf32>
    %13 = vector.broadcast %cst_10 : f32 to vector<192x256xf32>
    %14 = arith.minimumf %13, %12 : vector<192x256xf32>
    %15 = vector.shape_cast %14 : vector<192x256xf32> to vector<6x32x256xf32>
    %16 = arith.truncf %15 : vector<6x32x256xf32> to vector<6x32x256xbf16>
    %c0_11 = arith.constant 0 : index
    %c0_12 = arith.constant 0 : index
    %c0_13 = arith.constant 0 : index
    %17 = vector.load %arg14[%c0_11, %c0_12, %c0_13] : memref<6x32x256xbf16, #tpu.memory_space<vmem>>, vector<6x32x256xbf16>
    tpu.vector_store %arg14[%c0_11, %c0_12, %c0_13], %16 {strides = array<i32>} : memref<6x32x256xbf16, #tpu.memory_space<vmem>>, vector<6x32x256xbf16>,
    %cst_14 = arith.constant 0.000000e+00 : bf16
    %18 = vector.broadcast %cst_14 : bf16 to vector<6x1x256xbf16>
    %c0_15 = arith.constant 0 : index
    %c0_16 = arith.constant 0 : index
    %c0_17 = arith.constant 0 : index
    %19 = vector.load %arg14[%c0_15, %c0_16, %c0_17] : memref<6x32x256xbf16, #tpu.memory_space<vmem>>, vector<6x1x256xbf16>
    tpu.vector_store %arg14[%c0_15, %c0_16, %c0_17], %18 {strides = array<i32>} : memref<6x32x256xbf16, #tpu.memory_space<vmem>>, vector<6x1x256xbf16>,
    %c0_18 = arith.constant 0 : index
    %c17 = arith.constant 17 : index
    %c0_19 = arith.constant 0 : index
    %20 = vector.load %arg14[%c0_18, %c17, %c0_19] : memref<6x32x256xbf16, #tpu.memory_space<vmem>>, vector<6x1x256xbf16>
    tpu.vector_store %arg14[%c0_18, %c17, %c0_19], %18 {strides = array<i32>} : memref<6x32x256xbf16, #tpu.memory_space<vmem>>, vector<6x1x256xbf16>,
    %cst_20 = arith.constant 0.000000e+00 : bf16
    %21 = vector.broadcast %cst_20 : bf16 to vector<1x32x256xbf16>
    %c0_i32 = arith.constant 0 : i32
    %22 = arith.cmpi eq, %arg1, %c0_i32 : i32
    %23 = arith.extui %22 : i1 to i32
    %c0_i32_21 = arith.constant 0 : i32
    %24 = arith.cmpi ne, %23, %c0_i32_21 : i32
    scf.if %24 {
      %c0_54 = arith.constant 0 : index
      %c0_55 = arith.constant 0 : index
      %c0_56 = arith.constant 0 : index
      %126 = vector.load %arg14[%c0_54, %c0_55, %c0_56] : memref<6x32x256xbf16, #tpu.memory_space<vmem>>, vector<1x32x256xbf16>
      tpu.vector_store %arg14[%c0_54, %c0_55, %c0_56], %21 {strides = array<i32>} : memref<6x32x256xbf16, #tpu.memory_space<vmem>>, vector<1x32x256xbf16>,
    } else {
    }
    %c3_i32 = arith.constant 3 : i32
    %25 = arith.cmpi eq, %arg1, %c3_i32 : i32
    %26 = arith.extui %25 : i1 to i32
    %c0_i32_22 = arith.constant 0 : i32
    %27 = arith.cmpi ne, %26, %c0_i32_22 : i32
    scf.if %27 {
      %c5 = arith.constant 5 : index
      %c0_54 = arith.constant 0 : index
      %c0_55 = arith.constant 0 : index
      %126 = vector.load %arg14[%c5, %c0_54, %c0_55] : memref<6x32x256xbf16, #tpu.memory_space<vmem>>, vector<1x32x256xbf16>
      tpu.vector_store %arg14[%c5, %c0_54, %c0_55], %21 {strides = array<i32>} : memref<6x32x256xbf16, #tpu.memory_space<vmem>>, vector<1x32x256xbf16>,
    } else {
    }
    %c0_23 = arith.constant 0 : index
    %c0_24 = arith.constant 0 : index
    %28 = vector.load %arg6[%c0_23, %c0_24] : memref<9x256xf32, #tpu.memory_space<vmem>>, vector<9x256xf32>
    %cst_25 = arith.constant 0.000000e+00 : f32
    %29 = vector.broadcast %cst_25 : f32 to vector<4x16x256xf32>
    %c0_26 = arith.constant 0 : index
    %c0_27 = arith.constant 0 : index
    %c0_28 = arith.constant 0 : index
    %30 = vector.load %arg14[%c0_26, %c0_27, %c0_28] : memref<6x32x256xbf16, #tpu.memory_space<vmem>>, vector<4x32x256xbf16>
    %31 = vector.extract_strided_slice %30 {offsets = [0, 0, 0], sizes = [4, 16, 256], strides = [1, 1, 1]} : vector<4x32x256xbf16> to vector<4x16x256xbf16>
    %32 = vector.extract_strided_slice %28 {offsets = [0, 0], sizes = [1, 256], strides = [1, 1]} : vector<9x256xf32> to vector<1x256xf32>
    %33 = arith.extf %31 : vector<4x16x256xbf16> to vector<4x16x256xf32>
    %34 = vector.shape_cast %32 : vector<1x256xf32> to vector<1x1x256xf32>
    %35 = vector.broadcast %34 : vector<1x1x256xf32> to vector<4x16x256xf32>
    %36 = arith.mulf %33, %35 : vector<4x16x256xf32>
    %37 = arith.addf %29, %36 : vector<4x16x256xf32>
    %38 = vector.extract_strided_slice %30 {offsets = [0, 1, 0], sizes = [4, 16, 256], strides = [1, 1, 1]} : vector<4x32x256xbf16> to vector<4x16x256xbf16>
    %39 = vector.extract_strided_slice %28 {offsets = [1, 0], sizes = [1, 256], strides = [1, 1]} : vector<9x256xf32> to vector<1x256xf32>
    %40 = arith.extf %38 : vector<4x16x256xbf16> to vector<4x16x256xf32>
    %41 = vector.shape_cast %39 : vector<1x256xf32> to vector<1x1x256xf32>
    %42 = vector.broadcast %41 : vector<1x1x256xf32> to vector<4x16x256xf32>
    %43 = arith.mulf %40, %42 : vector<4x16x256xf32>
    %44 = arith.addf %37, %43 : vector<4x16x256xf32>
    %45 = vector.extract_strided_slice %30 {offsets = [0, 2, 0], sizes = [4, 16, 256], strides = [1, 1, 1]} : vector<4x32x256xbf16> to vector<4x16x256xbf16>
    %46 = vector.extract_strided_slice %28 {offsets = [2, 0], sizes = [1, 256], strides = [1, 1]} : vector<9x256xf32> to vector<1x256xf32>
    %47 = arith.extf %45 : vector<4x16x256xbf16> to vector<4x16x256xf32>
    %48 = vector.shape_cast %46 : vector<1x256xf32> to vector<1x1x256xf32>
    %49 = vector.broadcast %48 : vector<1x1x256xf32> to vector<4x16x256xf32>
    %50 = arith.mulf %47, %49 : vector<4x16x256xf32>
    %51 = arith.addf %44, %50 : vector<4x16x256xf32>
    %c1 = arith.constant 1 : index
    %c0_29 = arith.constant 0 : index
    %c0_30 = arith.constant 0 : index
    %52 = vector.load %arg14[%c1, %c0_29, %c0_30] : memref<6x32x256xbf16, #tpu.memory_space<vmem>>, vector<4x32x256xbf16>
    %53 = vector.extract_strided_slice %52 {offsets = [0, 0, 0], sizes = [4, 16, 256], strides = [1, 1, 1]} : vector<4x32x256xbf16> to vector<4x16x256xbf16>
    %54 = vector.extract_strided_slice %28 {offsets = [3, 0], sizes = [1, 256], strides = [1, 1]} : vector<9x256xf32> to vector<1x256xf32>
    %55 = arith.extf %53 : vector<4x16x256xbf16> to vector<4x16x256xf32>
    %56 = vector.shape_cast %54 : vector<1x256xf32> to vector<1x1x256xf32>
    %57 = vector.broadcast %56 : vector<1x1x256xf32> to vector<4x16x256xf32>
    %58 = arith.mulf %55, %57 : vector<4x16x256xf32>
    %59 = arith.addf %51, %58 : vector<4x16x256xf32>
    %60 = vector.extract_strided_slice %52 {offsets = [0, 1, 0], sizes = [4, 16, 256], strides = [1, 1, 1]} : vector<4x32x256xbf16> to vector<4x16x256xbf16>
    %61 = vector.extract_strided_slice %28 {offsets = [4, 0], sizes = [1, 256], strides = [1, 1]} : vector<9x256xf32> to vector<1x256xf32>
    %62 = arith.extf %60 : vector<4x16x256xbf16> to vector<4x16x256xf32>
    %63 = vector.shape_cast %61 : vector<1x256xf32> to vector<1x1x256xf32>
    %64 = vector.broadcast %63 : vector<1x1x256xf32> to vector<4x16x256xf32>
    %65 = arith.mulf %62, %64 : vector<4x16x256xf32>
    %66 = arith.addf %59, %65 : vector<4x16x256xf32>
    %67 = vector.extract_strided_slice %52 {offsets = [0, 2, 0], sizes = [4, 16, 256], strides = [1, 1, 1]} : vector<4x32x256xbf16> to vector<4x16x256xbf16>
    %68 = vector.extract_strided_slice %28 {offsets = [5, 0], sizes = [1, 256], strides = [1, 1]} : vector<9x256xf32> to vector<1x256xf32>
    %69 = arith.extf %67 : vector<4x16x256xbf16> to vector<4x16x256xf32>
    %70 = vector.shape_cast %68 : vector<1x256xf32> to vector<1x1x256xf32>
    %71 = vector.broadcast %70 : vector<1x1x256xf32> to vector<4x16x256xf32>
    %72 = arith.mulf %69, %71 : vector<4x16x256xf32>
    %73 = arith.addf %66, %72 : vector<4x16x256xf32>
    %c2 = arith.constant 2 : index
    %c0_31 = arith.constant 0 : index
    %c0_32 = arith.constant 0 : index
    %74 = vector.load %arg14[%c2, %c0_31, %c0_32] : memref<6x32x256xbf16, #tpu.memory_space<vmem>>, vector<4x32x256xbf16>
    %75 = vector.extract_strided_slice %74 {offsets = [0, 0, 0], sizes = [4, 16, 256], strides = [1, 1, 1]} : vector<4x32x256xbf16> to vector<4x16x256xbf16>
    %76 = vector.extract_strided_slice %28 {offsets = [6, 0], sizes = [1, 256], strides = [1, 1]} : vector<9x256xf32> to vector<1x256xf32>
    %77 = arith.extf %75 : vector<4x16x256xbf16> to vector<4x16x256xf32>
    %78 = vector.shape_cast %76 : vector<1x256xf32> to vector<1x1x256xf32>
    %79 = vector.broadcast %78 : vector<1x1x256xf32> to vector<4x16x256xf32>
    %80 = arith.mulf %77, %79 : vector<4x16x256xf32>
    %81 = arith.addf %73, %80 : vector<4x16x256xf32>
    %82 = vector.extract_strided_slice %74 {offsets = [0, 1, 0], sizes = [4, 16, 256], strides = [1, 1, 1]} : vector<4x32x256xbf16> to vector<4x16x256xbf16>
    %83 = vector.extract_strided_slice %28 {offsets = [7, 0], sizes = [1, 256], strides = [1, 1]} : vector<9x256xf32> to vector<1x256xf32>
    %84 = arith.extf %82 : vector<4x16x256xbf16> to vector<4x16x256xf32>
    %85 = vector.shape_cast %83 : vector<1x256xf32> to vector<1x1x256xf32>
    %86 = vector.broadcast %85 : vector<1x1x256xf32> to vector<4x16x256xf32>
    %87 = arith.mulf %84, %86 : vector<4x16x256xf32>
    %88 = arith.addf %81, %87 : vector<4x16x256xf32>
    %89 = vector.extract_strided_slice %74 {offsets = [0, 2, 0], sizes = [4, 16, 256], strides = [1, 1, 1]} : vector<4x32x256xbf16> to vector<4x16x256xbf16>
    %90 = vector.extract_strided_slice %28 {offsets = [8, 0], sizes = [1, 256], strides = [1, 1]} : vector<9x256xf32> to vector<1x256xf32>
    %91 = arith.extf %89 : vector<4x16x256xbf16> to vector<4x16x256xf32>
    %92 = vector.shape_cast %90 : vector<1x256xf32> to vector<1x1x256xf32>
    %93 = vector.broadcast %92 : vector<1x1x256xf32> to vector<4x16x256xf32>
    %94 = arith.mulf %91, %93 : vector<4x16x256xf32>
    %95 = arith.addf %88, %94 : vector<4x16x256xf32>
    %c0_33 = arith.constant 0 : index
    %c0_34 = arith.constant 0 : index
    %96 = vector.load %arg7[%c0_33, %c0_34] : memref<1x256xf32, #tpu.memory_space<vmem>>, vector<1x256xf32>
    %97 = vector.shape_cast %96 : vector<1x256xf32> to vector<1x1x256xf32>
    %98 = vector.broadcast %97 : vector<1x1x256xf32> to vector<4x16x256xf32>
    %99 = arith.mulf %95, %98 : vector<4x16x256xf32>
    %c0_35 = arith.constant 0 : index
    %c0_36 = arith.constant 0 : index
    %100 = vector.load %arg8[%c0_35, %c0_36] : memref<1x256xf32, #tpu.memory_space<vmem>>, vector<1x256xf32>
    %101 = vector.shape_cast %100 : vector<1x256xf32> to vector<1x1x256xf32>
    %102 = vector.broadcast %101 : vector<1x1x256xf32> to vector<4x16x256xf32>
    %103 = arith.addf %99, %102 : vector<4x16x256xf32>
    %cst_37 = arith.constant 0.000000e+00 : f32
    %cst_38 = arith.constant 6.000000e+00 : f32
    %104 = vector.broadcast %cst_37 : f32 to vector<4x16x256xf32>
    %105 = arith.maximumf %104, %103 : vector<4x16x256xf32>
    %106 = vector.broadcast %cst_38 : f32 to vector<4x16x256xf32>
    %107 = arith.minimumf %106, %105 : vector<4x16x256xf32>
    %108 = vector.shape_cast %107 : vector<4x16x256xf32> to vector<64x256xf32>
    %109 = arith.truncf %108 : vector<64x256xf32> to vector<64x256xbf16>
    %c0_39 = arith.constant 0 : index
    %c0_40 = arith.constant 0 : index
    %110 = vector.load %arg9[%c0_39, %c0_40] : memref<256x128xbf16, #tpu.memory_space<vmem>>, vector<256x128xbf16>
    %cst_41 = arith.constant dense<0.000000e+00> : vector<64x128xf32>
    %111 = tpu.matmul %109, %110, %cst_41 {dimension_numbers = #tpu.dot_dimension_numbers<[1], [0], [0], [1], [0, 0, 1, 1], [], []>} : vector<64x256xbf16>, vector<256x128xbf16>, vector<64x128xf32> -> vector<64x128xf32>
    %c0_42 = arith.constant 0 : index
    %c0_43 = arith.constant 0 : index
    %112 = vector.load %arg10[%c0_42, %c0_43] : memref<1x128xf32, #tpu.memory_space<vmem>>, vector<1x128xf32>
    %113 = vector.broadcast %112 : vector<1x128xf32> to vector<64x128xf32>
    %114 = arith.mulf %111, %113 : vector<64x128xf32>
    %c0_44 = arith.constant 0 : index
    %c0_45 = arith.constant 0 : index
    %115 = vector.load %arg11[%c0_44, %c0_45] : memref<1x128xf32, #tpu.memory_space<vmem>>, vector<1x128xf32>
    %116 = vector.broadcast %115 : vector<1x128xf32> to vector<64x128xf32>
    %117 = arith.addf %114, %116 : vector<64x128xf32>
    %c0_46 = arith.constant 0 : index
    %c0_47 = arith.constant 0 : index
    %c0_48 = arith.constant 0 : index
    %c0_49 = arith.constant 0 : index
    %118 = vector.load %arg12[%c0_46, %c0_47, %c0_48, %c0_49] : memref<1x4x16x128xf32, #tpu.memory_space<vmem>>, vector<1x4x16x128xf32>
    %119 = vector.shape_cast %118 : vector<1x4x16x128xf32> to vector<4x16x128xf32>
    %120 = vector.shape_cast %119 : vector<4x16x128xf32> to vector<64x128xf32>
    %121 = arith.addf %117, %120 : vector<64x128xf32>
    %122 = vector.shape_cast %121 : vector<64x128xf32> to vector<4x16x128xf32>
    %c0_50 = arith.constant 0 : index
    %c0_51 = arith.constant 0 : index
    %c0_52 = arith.constant 0 : index
    %c0_53 = arith.constant 0 : index
    %123 = vector.load %arg13[%c0_50, %c0_51, %c0_52, %c0_53] : memref<1x4x16x128xf32, #tpu.memory_space<vmem>>, vector<1x4x16x128xf32>
    %124 = vector.shape_cast %123 : vector<1x4x16x128xf32> to vector<4x16x128xf32>
    %125 = vector.shape_cast %122 : vector<4x16x128xf32> to vector<1x4x16x128xf32>
    tpu.vector_store %arg13[%c0_50, %c0_51, %c0_52, %c0_53], %125 {strides = array<i32>} : memref<1x4x16x128xf32, #tpu.memory_space<vmem>>, vector<1x4x16x128xf32>,
    return
  }
  func.func @transform_0(%arg0: i32, %arg1: i32) -> (i32, i32, i32, i32) {
    %c4_i32 = arith.constant 4 : i32
    %0 = arith.muli %arg0, %c4_i32 : i32
    %1 = arith.addi %0, %arg1 : i32
    %c0_i32 = arith.constant 0 : i32
    %c0_i32_0 = arith.constant 0 : i32
    %c0_i32_1 = arith.constant 0 : i32
    %c0_i32_2 = arith.constant 0 : i32
    return %1, %c0_i32, %c0_i32_0, %c0_i32_1 : i32, i32, i32, i32
  }
  func.func @transform_1(%arg0: i32, %arg1: i32) -> (i32, i32) {
    %c0_i32 = arith.constant 0 : i32
    %c0_i32_0 = arith.constant 0 : i32
    %c0_i32_1 = arith.constant 0 : i32
    return %c0_i32, %c0_i32_0 : i32, i32
  }
  func.func @transform_2(%arg0: i32, %arg1: i32) -> (i32, i32) {
    %c0_i32 = arith.constant 0 : i32
    %c0_i32_0 = arith.constant 0 : i32
    %c0_i32_1 = arith.constant 0 : i32
    return %c0_i32, %c0_i32_0 : i32, i32
  }
  func.func @transform_3(%arg0: i32, %arg1: i32) -> (i32, i32) {
    %c0_i32 = arith.constant 0 : i32
    %c0_i32_0 = arith.constant 0 : i32
    %c0_i32_1 = arith.constant 0 : i32
    return %c0_i32, %c0_i32_0 : i32, i32
  }
  func.func @transform_4(%arg0: i32, %arg1: i32) -> (i32, i32) {
    %c0_i32 = arith.constant 0 : i32
    %c0_i32_0 = arith.constant 0 : i32
    %c0_i32_1 = arith.constant 0 : i32
    return %c0_i32, %c0_i32_0 : i32, i32
  }
  func.func @transform_5(%arg0: i32, %arg1: i32) -> (i32, i32) {
    %c0_i32 = arith.constant 0 : i32
    %c0_i32_0 = arith.constant 0 : i32
    %c0_i32_1 = arith.constant 0 : i32
    return %c0_i32, %c0_i32_0 : i32, i32
  }
  func.func @transform_6(%arg0: i32, %arg1: i32) -> (i32, i32) {
    %c0_i32 = arith.constant 0 : i32
    %c0_i32_0 = arith.constant 0 : i32
    %c0_i32_1 = arith.constant 0 : i32
    return %c0_i32, %c0_i32_0 : i32, i32
  }
  func.func @transform_7(%arg0: i32, %arg1: i32) -> (i32, i32) {
    %c0_i32 = arith.constant 0 : i32
    %c0_i32_0 = arith.constant 0 : i32
    %c0_i32_1 = arith.constant 0 : i32
    return %c0_i32, %c0_i32_0 : i32, i32
  }
  func.func @transform_8(%arg0: i32, %arg1: i32) -> (i32, i32) {
    %c0_i32 = arith.constant 0 : i32
    %c0_i32_0 = arith.constant 0 : i32
    %c0_i32_1 = arith.constant 0 : i32
    return %c0_i32, %c0_i32_0 : i32, i32
  }
  func.func @transform_9(%arg0: i32, %arg1: i32) -> (i32, i32) {
    %c0_i32 = arith.constant 0 : i32
    %c0_i32_0 = arith.constant 0 : i32
    %c0_i32_1 = arith.constant 0 : i32
    return %c0_i32, %c0_i32_0 : i32, i32
  }
  func.func @transform_10(%arg0: i32, %arg1: i32) -> (i32, i32, i32, i32) {
    %c0_i32 = arith.constant 0 : i32
    %c0_i32_0 = arith.constant 0 : i32
    %c0_i32_1 = arith.constant 0 : i32
    return %arg0, %arg1, %c0_i32, %c0_i32_0 : i32, i32, i32, i32
  }
  func.func @transform_11(%arg0: i32, %arg1: i32) -> (i32, i32, i32, i32) {
    %c0_i32 = arith.constant 0 : i32
    %c0_i32_0 = arith.constant 0 : i32
    %c0_i32_1 = arith.constant 0 : i32
    return %arg0, %arg1, %c0_i32, %c0_i32_0 : i32, i32, i32, i32
  }
}

</mosaic_0001>

<llo_original>
// kernel: inverted_residual_forward.1
$region0: #{inverted_residual_forward.1}
  #allocation0 [shape = 'u32[]', space=smem, size = 0x4, offset = 0x4, fixed_abs, tag = 'smem constant byte address 0x4 - core index']
  #allocation1 [shape = 'u32[144,128]{1,0:T(1,128)}', space=vmem, size = 0x12000, scoped, tag = 'internal scratch']
  #allocation2 [shape = 'bf16[6,32,256]{2,1,0:T(16,128)(2,1)}', space=vmem, size = 0x18000, scoped, tag = 'scratch operand']
  %s0 = inlined_call_operand.hbm [shape: bf16[8,6,32,128], index: 0, kind: input, shape index: {}]
  %s1 = inlined_call_operand.hbm [shape: bf16[128,256], index: 1, kind: input, shape index: {}]
  %s2 = inlined_call_operand.hbm [shape: f32[1,256], index: 2, kind: input, shape index: {}]
  %s3 = inlined_call_operand.hbm [shape: f32[1,256], index: 3, kind: input, shape index: {}]
  %s4 = inlined_call_operand.hbm [shape: f32[9,256], index: 4, kind: input, shape index: {}]
  %s5 = inlined_call_operand.hbm [shape: f32[1,256], index: 5, kind: input, shape index: {}]
  %s6 = inlined_call_operand.hbm [shape: f32[1,256], index: 6, kind: input, shape index: {}]
  %s7 = inlined_call_operand.hbm [shape: bf16[256,128], index: 7, kind: input, shape index: {}]
  %s8 = inlined_call_operand.hbm [shape: f32[1,128], index: 8, kind: input, shape index: {}]
  %s9 = inlined_call_operand.hbm [shape: f32[1,128], index: 9, kind: input, shape index: {}]
  %s10 = inlined_call_operand.hbm [shape: f32[2,16,16,128], index: 10, kind: input, shape index: {}]
  %s11 = inlined_call_operand.hbm [shape: f32[2,16,16,128], index: 11, kind: output, shape index: {}]
  %s12 = sld [smem:[#allocation0]]
  $region129: #{inverted_residual_forward.1} parent=0
    _
  %s14 = ssub.s32 1, %s12
  %s15 = scalar_select 0, %s14, %s12
  $region1: #{inverted_residual_forward.1} parent=0
    #allocation3 [shape = 'u8[98304]{0}', space=vmem, size = 0x18000, scoped, tag = 'input window, operand 0']
    #allocation4 [shape = 's32[2]{0}', space=sflag, size = 0x8, scoped, tag = 'scoped memory for inverted_residual_forward.1']
    #allocation5 [shape = 's32[2]{0}', space=sflag, size = 0x8, scoped, tag = 'scoped memory for inverted_residual_forward.1']
    #allocation6 [shape = 'u8[65536]{0}', space=vmem, size = 0x10000, scoped, tag = 'input window, operand 1, single buffered']
    #allocation7 [shape = 's32[1]{0}', space=sflag, size = 0x4, scoped, tag = 'scoped memory for inverted_residual_forward.1']
    #allocation8 [shape = 'u8[1024]{0}', space=vmem, size = 0x400, scoped, tag = 'input window, operand 2, single buffered']
    #allocation9 [shape = 'u8[1024]{0}', space=vmem, size = 0x400, scoped, tag = 'input window, operand 3, single buffered']
    #allocation10 [shape = 's32[1]{0}', space=sflag, size = 0x4, scoped, tag = 'scoped memory for inverted_residual_forward.1']
    #allocation11 [shape = 'u8[16384]{0}', space=vmem, size = 0x4000, scoped, tag = 'input window, operand 4, single buffered']
    #allocation12 [shape = 'u8[1024]{0}', space=vmem, size = 0x400, scoped, tag = 'input window, operand 5, single buffered']
    #allocation13 [shape = 's32[1]{0}', space=sflag, size = 0x4, scoped, tag = 'scoped memory for inverted_residual_forward.1']
    #allocation14 [shape = 'u8[1024]{0}', space=vmem, size = 0x400, scoped, tag = 'input window, operand 6, single buffered']
    #allocation15 [shape = 'u8[65536]{0}', space=vmem, size = 0x10000, scoped, tag = 'input window, operand 7, single buffered']
    #allocation16 [shape = 's32[1]{0}', space=sflag, size = 0x4, scoped, tag = 'scoped memory for inverted_residual_forward.1']
    #allocation17 [shape = 'u8[512]{0}', space=vmem, size = 0x400, scoped, tag = 'input window, operand 8, single buffered']
    #allocation18 [shape = 'u8[512]{0}', space=vmem, size = 0x400, scoped, tag = 'input window, operand 9, single buffered']
    #allocation19 [shape = 's32[1]{0}', space=sflag, size = 0x4, scoped, tag = 'scoped memory for inverted_residual_forward.1']
    #allocation20 [shape = 'u8[65536]{0}', space=vmem, size = 0x10000, scoped, tag = 'input window, operand 10']
    #allocation21 [shape = 'u8[65536]{0}', space=vmem, size = 0x10000, scoped, tag = 'output window, operand 0']
    %16 = vsyncpa [#allocation4], 0
    %s17 = scalar_lea.sflag [#allocation4], 1
    %18 = vsyncpa %s17, 0
    %19 = vsyncpa [#allocation7], 0
    %20 = vsyncpa [#allocation10], 0
    %21 = vsyncpa [#allocation13], 0
    %22 = vsyncpa [#allocation16], 0
    %23 = vsyncpa [#allocation19], 0
    %24 = vsyncpa [#allocation5], 0
    %s25 = scalar_lea.sflag [#allocation5], 1
    %26 = vsyncpa %s25, 0
    loop: start=0, step=1, limit=10
    $region2: #{inverted_residual_forward.1} parent=1 // loop_pre_header
      _
    $region3: #{inverted_residual_forward.1} parent=1 // loop_header
      %s28 = sphi 0, %s32
      %p29 = scmp.ge.s32.totalorder %s28, 10
      %s35 = sphi 0, %s47
      %s36 = sphi 0, %s43
      %s37 = sphi 0, %s35
      %s38 = sphi 0, %s36
      %s39 = sphi 0, %s37
      %s40 = sphi 0, %s38
      %s54 = sphi 0, %s56
      %s57 = sphi 0, %s54
      %s58 = sphi 0, %s57
      %s74 = sphi 0, %s58
      %s78 = sphi 0, %s78
      %s80 = sphi 0, %s78
      %s81 = sphi 0, %s80
      %s95 = sphi 0, %s81
      %s99 = sphi 0, %s99
      %s101 = sphi 0, %s99
      %s102 = sphi 0, %s101
      %s116 = sphi 0, %s102
      %s120 = sphi 0, %s120
      %s122 = sphi 0, %s120
      %s123 = sphi 0, %s122
      %s137 = sphi 0, %s123
      %s141 = sphi 0, %s141
      %s143 = sphi 0, %s141
      %s144 = sphi 0, %s143
      %s158 = sphi 0, %s144
      %s162 = sphi 0, %s162
      %s164 = sphi 0, %s162
      %s165 = sphi 0, %s164
      %s179 = sphi 0, %s165
      %s183 = sphi 0, %s183
      %s185 = sphi 0, %s183
      %s186 = sphi 0, %s185
      %s200 = sphi 0, %s186
      %s204 = sphi 0, %s204
      %s206 = sphi 0, %s204
      %s207 = sphi 0, %s206
      %s221 = sphi 0, %s207
      %s225 = sphi 0, %s225
      %s227 = sphi 0, %s225
      %s228 = sphi 0, %s227
      %s242 = sphi 0, %s228
      %s246 = sphi 0, %s246
      %s248 = sphi 0, %s246
      %s249 = sphi 0, %s248
      %s263 = sphi 0, %s249
      %s271 = sphi 0, %s273
      %s274 = sphi 0, %s271
      %s275 = sphi 0, %s274
      %s291 = sphi 0, %s275
      %s299 = sphi 0, %s301
      %s302 = sphi 0, %s299
      %s303 = sphi 0, %s302
      %s319 = sphi 0, %s303
    $region4: #{inverted_residual_forward.1} parent=1 // loop_header_branch
      %31 = sbr.rel (%p29) target = $region8
    $region5: #{inverted_residual_forward.1} parent=1 // loop_body
      %s33 = ssub.s32 %s28, 1
      %s34 = ssub.s32 %s28, 2
      %s41 = sadd.s32 1, %s36
      %p42 = scmp.ge.s32.totalorder %s41, 4
      %s43 = scalar_select %p42, 0, %s41
      %s44 = sadd.s32 1, %s35
      %s45 = scalar_select %p42, %s44, %s35
      %p46 = scmp.ge.s32.totalorder %s45, 2
      %s47 = scalar_select %p46, 0, %s45
      %s48 = smul.u32 %s35, 4
      %s49 = sadd.s32 %s48, %s36
      %s50 = smul.u32 %s47, 4
      %s51 = sadd.s32 %s50, %s43
      %s52 = ssub.s32 %s49, %s51
      %p53 = scmp.eq.s32.totalorder %s52, 0
      %s55 = sadd.s32 %s54, 1
      %s56 = scalar_select %p53, %s54, %s55
      %p59 = pneg %p53
      %p60 = scmp.eq.s32.totalorder %s28, 7
      %p61 = por %p59, %p60
      %p62 = scmp.ne.s32.totalorder %s54, %s57
      %p63 = scmp.eq.s32.totalorder %s28, 0
      %p64 = por %p62, %p63
      %p65 = scmp.ne.s32.totalorder %s54, %s57
      %p66 = scmp.eq.s32.totalorder %s33, 7
      %p67 = por %p65, %p66
      %p68 = scmp.ne.s32.totalorder %s57, %s58
      %p69 = scmp.eq.s32.totalorder %s33, 0
      %p70 = por %p68, %p69
      %p71 = scmp.ne.s32.totalorder %s57, %s58
      %p72 = scmp.eq.s32.totalorder %s34, 7
      %p73 = por %p71, %p72
      %p75 = scmp.ne.s32.totalorder %s58, %s74
      %p76 = scmp.eq.s32.totalorder %s34, 0
      %p77 = por %p75, %p76
      %s79 = sadd.s32 %s78, 1
      %p82 = scmp.eq.s32.totalorder %s28, 7
      %p83 = scmp.ne.s32.totalorder %s78, %s80
      %p84 = scmp.eq.s32.totalorder %s28, 0
      %p85 = por %p83, %p84
      %p86 = scmp.ne.s32.totalorder %s78, %s80
      %p87 = scmp.eq.s32.totalorder %s33, 7
      %p88 = por %p86, %p87
      %p89 = scmp.ne.s32.totalorder %s80, %s81
      %p90 = scmp.eq.s32.totalorder %s33, 0
      %p91 = por %p89, %p90
      %p92 = scmp.ne.s32.totalorder %s80, %s81
      %p93 = scmp.eq.s32.totalorder %s34, 7
      %p94 = por %p92, %p93
      %p96 = scmp.ne.s32.totalorder %s81, %s95
      %p97 = scmp.eq.s32.totalorder %s34, 0
      %p98 = por %p96, %p97
      %s100 = sadd.s32 %s99, 1
      %p103 = scmp.eq.s32.totalorder %s28, 7
      %p104 = scmp.ne.s32.totalorder %s99, %s101
      %p105 = scmp.eq.s32.totalorder %s28, 0
      %p106 = por %p104, %p105
      %p107 = scmp.ne.s32.totalorder %s99, %s101
      %p108 = scmp.eq.s32.totalorder %s33, 7
      %p109 = por %p107, %p108
      %p110 = scmp.ne.s32.totalorder %s101, %s102
      %p111 = scmp.eq.s32.totalorder %s33, 0
      %p112 = por %p110, %p111
      %p113 = scmp.ne.s32.totalorder %s101, %s102
      %p114 = scmp.eq.s32.totalorder %s34, 7
      %p115 = por %p113, %p114
      %p117 = scmp.ne.s32.totalorder %s102, %s116
      %p118 = scmp.eq.s32.totalorder %s34, 0
      %p119 = por %p117, %p118
      %s121 = sadd.s32 %s120, 1
      %p124 = scmp.eq.s32.totalorder %s28, 7
      %p125 = scmp.ne.s32.totalorder %s120, %s122
      %p126 = scmp.eq.s32.totalorder %s28, 0
      %p127 = por %p125, %p126
      %p128 = scmp.ne.s32.totalorder %s120, %s122
      %p129 = scmp.eq.s32.totalorder %s33, 7
      %p130 = por %p128, %p129
      %p131 = scmp.ne.s32.totalorder %s122, %s123
      %p132 = scmp.eq.s32.totalorder %s33, 0
      %p133 = por %p131, %p132
      %p134 = scmp.ne.s32.totalorder %s122, %s123
      %p135 = scmp.eq.s32.totalorder %s34, 7
      %p136 = por %p134, %p135
      %p138 = scmp.ne.s32.totalorder %s123, %s137
      %p139 = scmp.eq.s32.totalorder %s34, 0
      %p140 = por %p138, %p139
      %s142 = sadd.s32 %s141, 1
      %p145 = scmp.eq.s32.totalorder %s28, 7
      %p146 = scmp.ne.s32.totalorder %s141, %s143
      %p147 = scmp.eq.s32.totalorder %s28, 0
      %p148 = por %p146, %p147
      %p149 = scmp.ne.s32.totalorder %s141, %s143
      %p150 = scmp.eq.s32.totalorder %s33, 7
      %p151 = por %p149, %p150
      %p152 = scmp.ne.s32.totalorder %s143, %s144
      %p153 = scmp.eq.s32.totalorder %s33, 0
      %p154 = por %p152, %p153
      %p155 = scmp.ne.s32.totalorder %s143, %s144
      %p156 = scmp.eq.s32.totalorder %s34, 7
      %p157 = por %p155, %p156
      %p159 = scmp.ne.s32.totalorder %s144, %s158
      %p160 = scmp.eq.s32.totalorder %s34, 0
      %p161 = por %p159, %p160
      %s163 = sadd.s32 %s162, 1
      %p166 = scmp.eq.s32.totalorder %s28, 7
      %p167 = scmp.ne.s32.totalorder %s162, %s164
      %p168 = scmp.eq.s32.totalorder %s28, 0
      %p169 = por %p167, %p168
      %p170 = scmp.ne.s32.totalorder %s162, %s164
      %p171 = scmp.eq.s32.totalorder %s33, 7
      %p172 = por %p170, %p171
      %p173 = scmp.ne.s32.totalorder %s164, %s165
      %p174 = scmp.eq.s32.totalorder %s33, 0
      %p175 = por %p173, %p174
      %p176 = scmp.ne.s32.totalorder %s164, %s165
      %p177 = scmp.eq.s32.totalorder %s34, 7
      %p178 = por %p176, %p177
      %p180 = scmp.ne.s32.totalorder %s165, %s179
      %p181 = scmp.eq.s32.totalorder %s34, 0
      %p182 = por %p180, %p181
      %s184 = sadd.s32 %s183, 1
      %p187 = scmp.eq.s32.totalorder %s28, 7
      %p188 = scmp.ne.s32.totalorder %s183, %s185
      %p189 = scmp.eq.s32.totalorder %s28, 0
      %p190 = por %p188, %p189
      %p191 = scmp.ne.s32.totalorder %s183, %s185
      %p192 = scmp.eq.s32.totalorder %s33, 7
      %p193 = por %p191, %p192
      %p194 = scmp.ne.s32.totalorder %s185, %s186
      %p195 = scmp.eq.s32.totalorder %s33, 0
      %p196 = por %p194, %p195
      %p197 = scmp.ne.s32.totalorder %s185, %s186
      %p198 = scmp.eq.s32.totalorder %s34, 7
      %p199 = por %p197, %p198
      %p201 = scmp.ne.s32.totalorder %s186, %s200
      %p202 = scmp.eq.s32.totalorder %s34, 0
      %p203 = por %p201, %p202
      %s205 = sadd.s32 %s204, 1
      %p208 = scmp.eq.s32.totalorder %s28, 7
      %p209 = scmp.ne.s32.totalorder %s204, %s206
      %p210 = scmp.eq.s32.totalorder %s28, 0
      %p211 = por %p209, %p210
      %p212 = scmp.ne.s32.totalorder %s204, %s206
      %p213 = scmp.eq.s32.totalorder %s33, 7
      %p214 = por %p212, %p213
      %p215 = scmp.ne.s32.totalorder %s206, %s207
      %p216 = scmp.eq.s32.totalorder %s33, 0
      %p217 = por %p215, %p216
      %p218 = scmp.ne.s32.totalorder %s206, %s207
      %p219 = scmp.eq.s32.totalorder %s34, 7
      %p220 = por %p218, %p219
      %p222 = scmp.ne.s32.totalorder %s207, %s221
      %p223 = scmp.eq.s32.totalorder %s34, 0
      %p224 = por %p222, %p223
      %s226 = sadd.s32 %s225, 1
      %p229 = scmp.eq.s32.totalorder %s28, 7
      %p230 = scmp.ne.s32.totalorder %s225, %s227
      %p231 = scmp.eq.s32.totalorder %s28, 0
      %p232 = por %p230, %p231
      %p233 = scmp.ne.s32.totalorder %s225, %s227
      %p234 = scmp.eq.s32.totalorder %s33, 7
      %p235 = por %p233, %p234
      %p236 = scmp.ne.s32.totalorder %s227, %s228
      %p237 = scmp.eq.s32.totalorder %s33, 0
      %p238 = por %p236, %p237
      %p239 = scmp.ne.s32.totalorder %s227, %s228
      %p240 = scmp.eq.s32.totalorder %s34, 7
      %p241 = por %p239, %p240
      %p243 = scmp.ne.s32.totalorder %s228, %s242
      %p244 = scmp.eq.s32.totalorder %s34, 0
      %p245 = por %p243, %p244
      %s247 = sadd.s32 %s246, 1
      %p250 = scmp.eq.s32.totalorder %s28, 7
      %p251 = scmp.ne.s32.totalorder %s246, %s248
      %p252 = scmp.eq.s32.totalorder %s28, 0
      %p253 = por %p251, %p252
      %p254 = scmp.ne.s32.totalorder %s246, %s248
      %p255 = scmp.eq.s32.totalorder %s33, 7
      %p256 = por %p254, %p255
      %p257 = scmp.ne.s32.totalorder %s248, %s249
      %p258 = scmp.eq.s32.totalorder %s33, 0
      %p259 = por %p257, %p258
      %p260 = scmp.ne.s32.totalorder %s248, %s249
      %p261 = scmp.eq.s32.totalorder %s34, 7
      %p262 = por %p260, %p261
      %p264 = scmp.ne.s32.totalorder %s249, %s263
      %p265 = scmp.eq.s32.totalorder %s34, 0
      %p266 = por %p264, %p265
      %s267 = ssub.s32 %s35, %s47
      %s268 = ssub.s32 %s36, %s43
      %s269 = sor.u32 %s267, %s268
      %p270 = scmp.eq.s32.totalorder %s269, 0
      %s272 = sadd.s32 %s271, 1
      %s273 = scalar_select %p270, %s271, %s272
      %p276 = pneg %p270
      %p277 = scmp.eq.s32.totalorder %s28, 7
      %p278 = por %p276, %p277
      %p279 = scmp.ne.s32.totalorder %s271, %s274
      %p280 = scmp.eq.s32.totalorder %s28, 0
      %p281 = por %p279, %p280
      %p282 = scmp.ne.s32.totalorder %s271, %s274
      %p283 = scmp.eq.s32.totalorder %s33, 7
      %p284 = por %p282, %p283
      %p285 = scmp.ne.s32.totalorder %s274, %s275
      %p286 = scmp.eq.s32.totalorder %s33, 0
      %p287 = por %p285, %p286
      %p288 = scmp.ne.s32.totalorder %s274, %s275
      %p289 = scmp.eq.s32.totalorder %s34, 7
      %p290 = por %p288, %p289
      %p292 = scmp.ne.s32.totalorder %s275, %s291
      %p293 = scmp.eq.s32.totalorder %s34, 0
      %p294 = por %p292, %p293
      %s295 = ssub.s32 %s35, %s47
      %s296 = ssub.s32 %s36, %s43
      %s297 = sor.u32 %s295, %s296
      %p298 = scmp.eq.s32.totalorder %s297, 0
      %s300 = sadd.s32 %s299, 1
      %s301 = scalar_select %p298, %s299, %s300
      %p304 = pneg %p298
      %p305 = scmp.eq.s32.totalorder %s28, 7
      %p306 = por %p304, %p305
      %p307 = scmp.ne.s32.totalorder %s299, %s302
      %p308 = scmp.eq.s32.totalorder %s28, 0
      %p309 = por %p307, %p308
      %p310 = scmp.ne.s32.totalorder %s299, %s302
      %p311 = scmp.eq.s32.totalorder %s33, 7
      %p312 = por %p310, %p311
      %p313 = scmp.ne.s32.totalorder %s302, %s303
      %p314 = scmp.eq.s32.totalorder %s33, 0
      %p315 = por %p313, %p314
      %p316 = scmp.ne.s32.totalorder %s302, %s303
      %p317 = scmp.eq.s32.totalorder %s34, 7
      %p318 = por %p316, %p317
      %p320 = scmp.ne.s32.totalorder %s303, %s319
      %p321 = scmp.eq.s32.totalorder %s34, 0
      %p322 = por %p320, %p321
      %p323 = scmp.le.s32.totalorder 1, %s28
      %p324 = scmp.lt.s32.totalorder %s28, 9
      %p325 = pnand %p323, %p324
      %p326 = pneg %p325
      // Predicated region
      $region9: #{inverted_residual_forward.1} parent=5 // pred_check
        _
      $region10: #{inverted_residual_forward.1} parent=5 // pred_check_branch
        %328 = sbr.rel (%p325) target = $region12
      $region11: #{inverted_residual_forward.1} parent=5 // pred_region
        %s329 = ssub.s32 %s28, 1
        // Predicated region
        $region13: #{inverted_residual_forward.1} parent=11 // pred_check
          %p330 = pneg %p91
        $region14: #{inverted_residual_forward.1} parent=11 // pred_check_branch
          %332 = sbr.rel (%p330) target = $region16
        $region15: #{inverted_residual_forward.1} parent=11 // pred_region
          %s334 = ssub.s32 2048, 2048
          %335 = vsyncadd [#allocation7], %s334
          %s336 = sshll.u32 [#allocation6], 4
          %s337 = int_to_ptr.vmem [resolvable:$true] %s336
          %342 = dma.hbm_to_vmem [thread:$0]  %s1, 2048, %s337, [#allocation7], 128, 128, 8
        $region16: #{inverted_residual_forward.1} parent=11 // pred_fallthru
          _
        // Predicated region
        $region17: #{inverted_residual_forward.1} parent=11 // pred_check
          %p343 = pneg %p112
        $region18: #{inverted_residual_forward.1} parent=11 // pred_check_branch
          %345 = sbr.rel (%p343) target = $region20
        $region19: #{inverted_residual_forward.1} parent=11 // pred_region
          %s347 = ssub.s32 32, 32
          %348 = vsyncadd [#allocation7], %s347
          %s350 = sshll.u32 [#allocation8], 4
          %s351 = int_to_ptr.vmem [resolvable:$true] %s350
          %353 = dma.hbm_to_vmem [thread:$0]  %s2, 32, %s351, [#allocation7]
        $region20: #{inverted_residual_forward.1} parent=11 // pred_fallthru
          _
        // Predicated region
        $region21: #{inverted_residual_forward.1} parent=11 // pred_check
          %p354 = pneg %p133
        $region22: #{inverted_residual_forward.1} parent=11 // pred_check_branch
          %356 = sbr.rel (%p354) target = $region24
        $region23: #{inverted_residual_forward.1} parent=11 // pred_region
          %s358 = ssub.s32 32, 32
          %359 = vsyncadd [#allocation10], %s358
          %s361 = sshll.u32 [#allocation9], 4
          %s362 = int_to_ptr.vmem [resolvable:$true] %s361
          %364 = dma.hbm_to_vmem [thread:$0]  %s3, 32, %s362, [#allocation10]
        $region24: #{inverted_residual_forward.1} parent=11 // pred_fallthru
          _
        // Predicated region
        $region25: #{inverted_residual_forward.1} parent=11 // pred_check
          %p365 = pneg %p154
        $region26: #{inverted_residual_forward.1} parent=11 // pred_check_branch
          %367 = sbr.rel (%p365) target = $region28
        $region27: #{inverted_residual_forward.1} parent=11 // pred_region
          %s369 = ssub.s32 512, 512
          %370 = vsyncadd [#allocation10], %s369
          %s371 = sshll.u32 [#allocation11], 4
          %s372 = int_to_ptr.vmem [resolvable:$true] %s371
          %377 = dma.hbm_to_vmem [thread:$0]  %s4, 512, %s372, [#allocation10], 256, 256, 16
        $region28: #{inverted_residual_forward.1} parent=11 // pred_fallthru
          _
        // Predicated region
        $region29: #{inverted_residual_forward.1} parent=11 // pred_check
          %p378 = pneg %p175
        $region30: #{inverted_residual_forward.1} parent=11 // pred_check_branch
          %380 = sbr.rel (%p378) target = $region32
        $region31: #{inverted_residual_forward.1} parent=11 // pred_region
          %s382 = ssub.s32 32, 32
          %383 = vsyncadd [#allocation13], %s382
          %s385 = sshll.u32 [#allocation12], 4
          %s386 = int_to_ptr.vmem [resolvable:$true] %s385
          %388 = dma.hbm_to_vmem [thread:$0]  %s5, 32, %s386, [#allocation13]
        $region32: #{inverted_residual_forward.1} parent=11 // pred_fallthru
          _
        // Predicated region
        $region33: #{inverted_residual_forward.1} parent=11 // pred_check
          %p389 = pneg %p196
        $region34: #{inverted_residual_forward.1} parent=11 // pred_check_branch
          %391 = sbr.rel (%p389) target = $region36
        $region35: #{inverted_residual_forward.1} parent=11 // pred_region
          %s393 = ssub.s32 32, 32
          %394 = vsyncadd [#allocation13], %s393
          %s396 = sshll.u32 [#allocation14], 4
          %s397 = int_to_ptr.vmem [resolvable:$true] %s396
          %399 = dma.hbm_to_vmem [thread:$0]  %s6, 32, %s397, [#allocation13]
        $region36: #{inverted_residual_forward.1} parent=11 // pred_fallthru
          _
        // Predicated region
        $region37: #{inverted_residual_forward.1} parent=11 // pred_check
          %p400 = pneg %p217
        $region38: #{inverted_residual_forward.1} parent=11 // pred_check_branch
          %402 = sbr.rel (%p400) target = $region40
        $region39: #{inverted_residual_forward.1} parent=11 // pred_region
          %s404 = ssub.s32 2048, 2048
          %405 = vsyncadd [#allocation16], %s404
          %s406 = sshll.u32 [#allocation15], 4
          %s407 = int_to_ptr.vmem [resolvable:$true] %s406
          %412 = dma.hbm_to_vmem [thread:$0]  %s7, 2048, %s407, [#allocation16], 64, 64, 4
        $region40: #{inverted_residual_forward.1} parent=11 // pred_fallthru
          _
        // Predicated region
        $region41: #{inverted_residual_forward.1} parent=11 // pred_check
          %p413 = pneg %p238
        $region42: #{inverted_residual_forward.1} parent=11 // pred_check_branch
          %415 = sbr.rel (%p413) target = $region44
        $region43: #{inverted_residual_forward.1} parent=11 // pred_region
          %s417 = ssub.s32 16, 16
          %418 = vsyncadd [#allocation16], %s417
          %s420 = sshll.u32 [#allocation17], 4
          %s421 = int_to_ptr.vmem [resolvable:$true] %s420
          %423 = dma.hbm_to_vmem [thread:$0]  %s8, 16, %s421, [#allocation16]
        $region44: #{inverted_residual_forward.1} parent=11 // pred_fallthru
          _
        // Predicated region
        $region45: #{inverted_residual_forward.1} parent=11 // pred_check
          %p424 = pneg %p259
        $region46: #{inverted_residual_forward.1} parent=11 // pred_check_branch
          %426 = sbr.rel (%p424) target = $region48
        $region47: #{inverted_residual_forward.1} parent=11 // pred_region
          %s428 = ssub.s32 16, 16
          %429 = vsyncadd [#allocation19], %s428
          %s431 = sshll.u32 [#allocation18], 4
          %s432 = int_to_ptr.vmem [resolvable:$true] %s431
          %434 = dma.hbm_to_vmem [thread:$0]  %s9, 16, %s432, [#allocation19]
        $region48: #{inverted_residual_forward.1} parent=11 // pred_fallthru
          _
      $region12: #{inverted_residual_forward.1} parent=5 // pred_fallthru
        _
      %p435 = scmp.lt.s32.totalorder %s28, 8
      // Predicated region
      $region49: #{inverted_residual_forward.1} parent=5 // pred_check
        %p436 = pneg %p435
      $region50: #{inverted_residual_forward.1} parent=5 // pred_check_branch
        %438 = sbr.rel (%p436) target = $region52
      $region51: #{inverted_residual_forward.1} parent=5 // pred_region
        // Predicated region
        $region53: #{inverted_residual_forward.1} parent=51 // pred_check
          %p439 = pneg %p64
        $region54: #{inverted_residual_forward.1} parent=51 // pred_check_branch
          %441 = sbr.rel (%p439) target = $region56
        $region55: #{inverted_residual_forward.1} parent=51 // pred_region
          %s442 = sand.u32 %s28, 1
          %s443 = scalar_lea.sflag [#allocation4], %s442
          %s444 = sand.u32 %s54, 1
          %s445 = smul.addr %s444, 96
          %s446 = scalar_lea.vmem [#allocation3], %s445
          %s447 = smul.u32 %s35, 4
          %s448 = sadd.s32 %s447, %s36
          %s450 = ssub.s32 1536, 1536
          %451 = vsyncadd %s443, %s450
          %s452 = smul.addr %s448, 24
          %s453 = smul.addr %s452, 64
          %s454 = scalar_lea.hbm %s0, %s453
          %s455 = sshll.u32 %s446, 4
          %s456 = int_to_ptr.vmem [resolvable:$true] %s455
          %461 = dma.hbm_to_vmem [thread:$0]  %s454, 1536, %s456, %s443, 64, 64, 4
        $region56: #{inverted_residual_forward.1} parent=51 // pred_fallthru
          _
        // Predicated region
        $region57: #{inverted_residual_forward.1} parent=51 // pred_check
          %p462 = pneg %p281
        $region58: #{inverted_residual_forward.1} parent=51 // pred_check_branch
          %464 = sbr.rel (%p462) target = $region60
        $region59: #{inverted_residual_forward.1} parent=51 // pred_region
          %s465 = sand.u32 %s28, 1
          %s466 = scalar_lea.sflag [#allocation4], %s465
          %s467 = sand.u32 %s271, 1
          %s468 = smul.addr %s467, 64
          %s469 = scalar_lea.vmem [#allocation20], %s468
          %s470 = smul.u32 4, %s36
          %s472 = ssub.s32 1024, 1024
          %473 = vsyncadd %s466, %s472
          %s474 = smul.addr %s470, 2
          %s475 = smul.addr %s35, 32
          %s476 = sadd.s32 %s474, %s475
          %s477 = smul.addr %s476, 128
          %s478 = scalar_lea.hbm %s10, %s477
          %s479 = sshll.u32 %s469, 4
          %s480 = int_to_ptr.vmem [resolvable:$true] %s479
          %485 = dma.hbm_to_vmem [thread:$0]  %s478, 1024, %s480, %s466, 128, 128, 8
        $region60: #{inverted_residual_forward.1} parent=51 // pred_fallthru
          _
      $region52: #{inverted_residual_forward.1} parent=5 // pred_fallthru
        _
      %p486 = scmp.le.s32.totalorder 1, %s28
      %p487 = scmp.lt.s32.totalorder %s28, 9
      %p488 = pnand %p486, %p487
      %p489 = pneg %p488
      // Predicated region
      $region61: #{inverted_residual_forward.1} parent=5 // pred_check
        _
      $region62: #{inverted_residual_forward.1} parent=5 // pred_check_branch
        %491 = sbr.rel (%p488) target = $region64
      $region63: #{inverted_residual_forward.1} parent=5 // pred_region
        %s492 = ssub.s32 %s28, 1
        %s493 = sand.u32 %s33, 1
        %s494 = scalar_lea.sflag [#allocation4], %s493
        %s495 = sand.u32 %s57, 1
        %s496 = smul.addr %s495, 96
        %s497 = scalar_lea.vmem [#allocation3], %s496
        // Predicated region
        $region65: #{inverted_residual_forward.1} parent=63 // pred_check
          %p498 = pneg %p70
        $region66: #{inverted_residual_forward.1} parent=63 // pred_check_branch
          %500 = sbr.rel (%p498) target = $region68
        $region67: #{inverted_residual_forward.1} parent=63 // pred_region
          %501 = dma.done %s494, 1536
        $region68: #{inverted_residual_forward.1} parent=63 // pred_fallthru
          _
        // Predicated region
        $region69: #{inverted_residual_forward.1} parent=63 // pred_check
          %p502 = pneg %p91
        $region70: #{inverted_residual_forward.1} parent=63 // pred_check_branch
          %504 = sbr.rel (%p502) target = $region72
        $region71: #{inverted_residual_forward.1} parent=63 // pred_region
          %505 = dma.done [#allocation7], 2048
        $region72: #{inverted_residual_forward.1} parent=63 // pred_fallthru
          _
        // Predicated region
        $region73: #{inverted_residual_forward.1} parent=63 // pred_check
          %p506 = pneg %p112
        $region74: #{inverted_residual_forward.1} parent=63 // pred_check_branch
          %508 = sbr.rel (%p506) target = $region76
        $region75: #{inverted_residual_forward.1} parent=63 // pred_region
          %509 = dma.done [#allocation7], 32
        $region76: #{inverted_residual_forward.1} parent=63 // pred_fallthru
          _
        // Predicated region
        $region77: #{inverted_residual_forward.1} parent=63 // pred_check
          %p510 = pneg %p133
        $region78: #{inverted_residual_forward.1} parent=63 // pred_check_branch
          %512 = sbr.rel (%p510) target = $region80
        $region79: #{inverted_residual_forward.1} parent=63 // pred_region
          %513 = dma.done [#allocation10], 32
        $region80: #{inverted_residual_forward.1} parent=63 // pred_fallthru
          _
        // Predicated region
        $region81: #{inverted_residual_forward.1} parent=63 // pred_check
          %p514 = pneg %p154
        $region82: #{inverted_residual_forward.1} parent=63 // pred_check_branch
          %516 = sbr.rel (%p514) target = $region84
        $region83: #{inverted_residual_forward.1} parent=63 // pred_region
          %517 = dma.done [#allocation10], 512
        $region84: #{inverted_residual_forward.1} parent=63 // pred_fallthru
          _
        // Predicated region
        $region85: #{inverted_residual_forward.1} parent=63 // pred_check
          %p518 = pneg %p175
        $region86: #{inverted_residual_forward.1} parent=63 // pred_check_branch
          %520 = sbr.rel (%p518) target = $region88
        $region87: #{inverted_residual_forward.1} parent=63 // pred_region
          %521 = dma.done [#allocation13], 32
        $region88: #{inverted_residual_forward.1} parent=63 // pred_fallthru
          _
        // Predicated region
        $region89: #{inverted_residual_forward.1} parent=63 // pred_check
          %p522 = pneg %p196
        $region90: #{inverted_residual_forward.1} parent=63 // pred_check_branch
          %524 = sbr.rel (%p522) target = $region92
        $region91: #{inverted_residual_forward.1} parent=63 // pred_region
          %525 = dma.done [#allocation13], 32
        $region92: #{inverted_residual_forward.1} parent=63 // pred_fallthru
          _
        // Predicated region
        $region93: #{inverted_residual_forward.1} parent=63 // pred_check
          %p526 = pneg %p217
        $region94: #{inverted_residual_forward.1} parent=63 // pred_check_branch
          %528 = sbr.rel (%p526) target = $region96
        $region95: #{inverted_residual_forward.1} parent=63 // pred_region
          %529 = dma.done [#allocation16], 2048
        $region96: #{inverted_residual_forward.1} parent=63 // pred_fallthru
          _
        // Predicated region
        $region97: #{inverted_residual_forward.1} parent=63 // pred_check
          %p530 = pneg %p238
        $region98: #{inverted_residual_forward.1} parent=63 // pred_check_branch
          %532 = sbr.rel (%p530) target = $region100
        $region99: #{inverted_residual_forward.1} parent=63 // pred_region
          %533 = dma.done [#allocation16], 16
        $region100: #{inverted_residual_forward.1} parent=63 // pred_fallthru
          _
        // Predicated region
        $region101: #{inverted_residual_forward.1} parent=63 // pred_check
          %p534 = pneg %p259
        $region102: #{inverted_residual_forward.1} parent=63 // pred_check_branch
          %536 = sbr.rel (%p534) target = $region104
        $region103: #{inverted_residual_forward.1} parent=63 // pred_region
          %537 = dma.done [#allocation19], 16
        $region104: #{inverted_residual_forward.1} parent=63 // pred_fallthru
          _
        %s538 = sand.u32 %s33, 1
        %s539 = scalar_lea.sflag [#allocation4], %s538
        %s540 = sand.u32 %s274, 1
        %s541 = smul.addr %s540, 64
        %s542 = scalar_lea.vmem [#allocation20], %s541
        // Predicated region
        $region105: #{inverted_residual_forward.1} parent=63 // pred_check
          %p543 = pneg %p287
        $region106: #{inverted_residual_forward.1} parent=63 // pred_check_branch
          %545 = sbr.rel (%p543) target = $region108
        $region107: #{inverted_residual_forward.1} parent=63 // pred_region
          %546 = dma.done %s539, 1024
        $region108: #{inverted_residual_forward.1} parent=63 // pred_fallthru
          _
        %s547 = sand.u32 %s33, 1
        %s548 = scalar_lea.sflag [#allocation4], %s547
        %s549 = sand.u32 %s57, 1
        %s550 = smul.addr %s549, 96
        %s551 = scalar_lea.vmem [#allocation3], %s550
        %p552 = pneg %p70
        %p553 = pneg %p67
        %p554 = pneg %p91
        %p555 = pneg %p88
        %p556 = pneg %p112
        %p557 = pneg %p109
        %p558 = pneg %p133
        %p559 = pneg %p130
        %p560 = pneg %p154
        %p561 = pneg %p151
        %p562 = pneg %p175
        %p563 = pneg %p172
        %p564 = pneg %p196
        %p565 = pneg %p193
        %p566 = pneg %p217
        %p567 = pneg %p214
        %p568 = pneg %p238
        %p569 = pneg %p235
        %p570 = pneg %p259
        %p571 = pneg %p256
        %s572 = sand.u32 %s33, 1
        %s573 = scalar_lea.sflag [#allocation4], %s572
        %s574 = sand.u32 %s274, 1
        %s575 = smul.addr %s574, 64
        %s576 = scalar_lea.vmem [#allocation20], %s575
        %p577 = pneg %p287
        %p578 = pneg %p284
        %p579 = pneg %p315
        %p580 = pneg %p312
        %s581 = sand.u32 %s302, 1
        %s582 = scalar_lea.sflag [#allocation5], %s581
        %s583 = sand.u32 %s302, 1
        %s584 = smul.addr %s583, 64
        %s585 = scalar_lea.vmem [#allocation21], %s584
        %s586 = smul.u32 %s37, 4
        %s587 = sadd.s32 %s586, %s38
        %s588 = smul.u32 4, %s38
        %s589 = smul.u32 4, %s38
        %v591 = vld [vmem:[%s497] sm:$0xf]
        %v592 = vld [vmem:[%s497 + $0x4] sm:$0xf]
        %v593 = vld [vmem:[%s497 + $0x8] sm:$0xf]
        %v594 = vld [vmem:[%s497 + $0xc] sm:$0xf]
        %v595 = vld [vmem:[%s497 + $0x10] sm:$0xf]
        %v596 = vld [vmem:[%s497 + $0x14] sm:$0xf]
        %v597 = vld [vmem:[%s497 + $0x18] sm:$0xf]
        %v598 = vld [vmem:[%s497 + $0x1c] sm:$0xf]
        %v599 = vld [vmem:[%s497 + $0x20] sm:$0xf]
        %v600 = vld [vmem:[%s497 + $0x24] sm:$0xf]
        %v601 = vld [vmem:[%s497 + $0x28] sm:$0xf]
        %v602 = vld [vmem:[%s497 + $0x2c] sm:$0xf]
        %v603 = vld [vmem:[%s497 + $0x30] sm:$0xf]
        %v604 = vld [vmem:[%s497 + $0x34] sm:$0xf]
        %v605 = vld [vmem:[%s497 + $0x38] sm:$0xf]
        %v606 = vld [vmem:[%s497 + $0x3c] sm:$0xf]
        %v607 = vld [vmem:[%s497 + $0x40] sm:$0xf]
        %v608 = vld [vmem:[%s497 + $0x44] sm:$0xf]
        %v609 = vld [vmem:[%s497 + $0x48] sm:$0xf]
        %v610 = vld [vmem:[%s497 + $0x4c] sm:$0xf]
        %v611 = vld [vmem:[%s497 + $0x50] sm:$0xf]
        %v612 = vld [vmem:[%s497 + $0x54] sm:$0xf]
        %v613 = vld [vmem:[%s497 + $0x58] sm:$0xf]
        %v614 = vld [vmem:[%s497 + $0x5c] sm:$0xf]
        %v615 = vld [vmem:[#allocation6] sm:$0xff]
        %v616 = vld [vmem:[#allocation6 + $0x8] sm:$0xff]
        %v617 = vld [vmem:[#allocation6 + $0x10] sm:$0xff]
        %v618 = vld [vmem:[#allocation6 + $0x18] sm:$0xff]
        %v619 = vld [vmem:[#allocation6 + $0x20] sm:$0xff]
        %v620 = vld [vmem:[#allocation6 + $0x28] sm:$0xff]
        %v621 = vld [vmem:[#allocation6 + $0x30] sm:$0xff]
        %v622 = vld [vmem:[#allocation6 + $0x38] sm:$0xff]
        %v623 = vld [vmem:[#allocation6 + $0x40] sm:$0xff]
        %v624 = vld [vmem:[#allocation6 + $0x48] sm:$0xff]
        %v625 = vld [vmem:[#allocation6 + $0x50] sm:$0xff]
        %v626 = vld [vmem:[#allocation6 + $0x58] sm:$0xff]
        %v627 = vld [vmem:[#allocation6 + $0x60] sm:$0xff]
        %v628 = vld [vmem:[#allocation6 + $0x68] sm:$0xff]
        %v629 = vld [vmem:[#allocation6 + $0x70] sm:$0xff]
        %v630 = vld [vmem:[#allocation6 + $0x78] sm:$0xff]
        %v655 = vunpack.c.l.b16 %v591
        %v656 = vunpack.c.l.b16 %v592
        %v657 = vunpack.c.l.b16 %v593
        %v658 = vunpack.c.l.b16 %v594
        %v659 = vunpack.c.l.b16 %v595
        %v660 = vunpack.c.l.b16 %v596
        %v661 = vunpack.c.l.b16 %v597
        %v662 = vunpack.c.l.b16 %v598
        %v663 = vunpack.c.l.b16 %v599
        %v664 = vunpack.c.l.b16 %v600
        %v665 = vunpack.c.l.b16 %v601
        %v666 = vunpack.c.l.b16 %v602
        %v667 = vunpack.c.l.b16 %v603
        %v668 = vunpack.c.l.b16 %v604
        %v669 = vunpack.c.l.b16 %v605
        %v670 = vunpack.c.l.b16 %v606
        %v671 = vunpack.c.l.b16 %v607
        %v672 = vunpack.c.l.b16 %v608
        %v673 = vunpack.c.l.b16 %v609
        %v674 = vunpack.c.l.b16 %v610
        %v675 = vunpack.c.l.b16 %v611
        %v676 = vunpack.c.l.b16 %v612
        %v677 = vunpack.c.l.b16 %v613
        %v678 = vunpack.c.l.b16 %v614
        %v679 = vpack.c.b16 %v656, %v655
        %v680 = vpack.c.b16 %v658, %v657
        %v681 = vpack.c.b16 %v660, %v659
        %v682 = vpack.c.b16 %v662, %v661
        %v683 = vpack.c.b16 %v664, %v663
        %v684 = vpack.c.b16 %v666, %v665
        %v685 = vpack.c.b16 %v668, %v667
        %v686 = vpack.c.b16 %v670, %v669
        %v687 = vpack.c.b16 %v672, %v671
        %v688 = vpack.c.b16 %v674, %v673
        %v689 = vpack.c.b16 %v676, %v675
        %v690 = vpack.c.b16 %v678, %v677
        %v719 = vunpack.c.l.b16 %v615
        %v720 = vunpack.c.h.b16 %v615
        %v721 = vunpack.c.l.b16 %v616
        %v722 = vunpack.c.h.b16 %v616
        %v723 = vunpack.c.l.b16 %v617
        %v724 = vunpack.c.h.b16 %v617
        %v725 = vunpack.c.l.b16 %v618
        %v726 = vunpack.c.h.b16 %v618
        %v727 = vunpack.c.l.b16 %v619
        %v728 = vunpack.c.h.b16 %v619
        %v729 = vunpack.c.l.b16 %v620
        %v730 = vunpack.c.h.b16 %v620
        %v731 = vunpack.c.l.b16 %v621
        %v732 = vunpack.c.h.b16 %v621
        %v733 = vunpack.c.l.b16 %v622
        %v734 = vunpack.c.h.b16 %v622
        %v735 = vunpack.c.l.b16 %v623
        %v736 = vunpack.c.h.b16 %v623
        %v737 = vunpack.c.l.b16 %v624
        %v738 = vunpack.c.h.b16 %v624
        %v739 = vunpack.c.l.b16 %v625
        %v740 = vunpack.c.h.b16 %v625
        %v741 = vunpack.c.l.b16 %v626
        %v742 = vunpack.c.h.b16 %v626
        %v743 = vunpack.c.l.b16 %v627
        %v744 = vunpack.c.h.b16 %v627
        %v745 = vunpack.c.l.b16 %v628
        %v746 = vunpack.c.h.b16 %v628
        %v747 = vunpack.c.l.b16 %v629
        %v748 = vunpack.c.h.b16 %v629
        %v749 = vunpack.c.l.b16 %v630
        %v750 = vunpack.c.h.b16 %v630
        %v751 = vpack.c.b16 %v721, %v719
        %v752 = vpack.c.b16 %v722, %v720
        %v753 = vpack.c.b16 %v725, %v723
        %v754 = vpack.c.b16 %v726, %v724
        %v755 = vpack.c.b16 %v729, %v727
        %v756 = vpack.c.b16 %v730, %v728
        %v757 = vpack.c.b16 %v733, %v731
        %v758 = vpack.c.b16 %v734, %v732
        %v759 = vpack.c.b16 %v737, %v735
        %v760 = vpack.c.b16 %v738, %v736
        %v761 = vpack.c.b16 %v741, %v739
        %v762 = vpack.c.b16 %v742, %v740
        %v763 = vpack.c.b16 %v745, %v743
        %v764 = vpack.c.b16 %v746, %v744
        %v765 = vpack.c.b16 %v749, %v747
        %v766 = vpack.c.b16 %v750, %v748
        %783 = vmatprep.subr.bf16.mxu0 %v752
        %784 = vmatpush1.bf16.msra.mxu0 %v751
        %785 = vmatprep.subr.bf16.mxu0 %v754
        %786 = vmatpush1.bf16.msra.mxu0 %v753
        %787 = vmatprep.subr.bf16.mxu0 %v756
        %788 = vmatpush1.bf16.msra.mxu0 %v755
        %789 = vmatprep.subr.bf16.mxu0 %v758
        %790 = vmatpush1.bf16.msra.mxu0 %v757
        %791 = vmatprep.subr.bf16.mxu0 %v760
        %792 = vmatpush1.bf16.msra.mxu0 %v759
        %793 = vmatprep.subr.bf16.mxu0 %v762
        %794 = vmatpush1.bf16.msra.mxu0 %v761
        %795 = vmatprep.subr.bf16.mxu0 %v764
        %796 = vmatpush1.bf16.msra.mxu0 %v763
        %797 = vmatprep.subr.bf16.mxu0 %v766
        %798 = vmatpush1.bf16.msra.mxu0 %v765
        %799 = vmatprep.subr.bf16.mxu0 0
        %800 = vmatpush1.bf16.msra.mxu0 0
        %801 = vmatprep.subr.bf16.mxu0 0
        %802 = vmatpush1.bf16.msra.mxu0 0
        %803 = vmatprep.subr.bf16.mxu0 0
        %804 = vmatpush1.bf16.msra.mxu0 0
        %805 = vmatprep.subr.bf16.mxu0 0
        %806 = vmatpush1.bf16.msra.mxu0 0
        %807 = vmatprep.subr.bf16.mxu0 0
        %808 = vmatpush1.bf16.msra.mxu0 0
        %809 = vmatprep.subr.bf16.mxu0 0
        %810 = vmatpush1.bf16.msra.mxu0 0
        %811 = vmatprep.subr.bf16.mxu0 0
        %812 = vmatpush1.bf16.msra.mxu0 0
        %813 = vmatprep.subr.bf16.mxu0 0
        %814 = vmatpush1.bf16.msra.mxu0 0
        %815 = vmatprep.mubr.bf16.mxu0 0
        %816 = vmatmul.mubr.bf16.gmra.mrb[0].mxu0 %v679
        %v817 = vpop.f32.mrb[0].mxu0
        %v818 = vadd.f32 0.0, %v817
        %v819 = vpop.f32.mrb[0].mxu0
        %v820 = vadd.f32 0.0, %v819
        %v821 = vpop.f32.mrb[0].mxu0
        %v822 = vadd.f32 0.0, %v821
        %v823 = vpop.f32.mrb[0].mxu0
        %v824 = vadd.f32 0.0, %v823
        %825 = vmatprep.mubr.bf16.mxu0 0
        %826 = vmatmul.mubr.bf16.gmra.mrb[0].mxu0 %v680
        %v827 = vpop.f32.mrb[0].mxu0
        %v828 = vadd.f32 0.0, %v827
        %v829 = vpop.f32.mrb[0].mxu0
        %v830 = vadd.f32 0.0, %v829
        %v831 = vpop.f32.mrb[0].mxu0
        %v832 = vadd.f32 0.0, %v831
        %v833 = vpop.f32.mrb[0].mxu0
        %v834 = vadd.f32 0.0, %v833
        %835 = vmatprep.mubr.bf16.mxu0 0
        %836 = vmatmul.mubr.bf16.gmra.mrb[0].mxu0 %v681
        %v837 = vpop.f32.mrb[0].mxu0
        %v838 = vadd.f32 0.0, %v837
        %v839 = vpop.f32.mrb[0].mxu0
        %v840 = vadd.f32 0.0, %v839
        %v841 = vpop.f32.mrb[0].mxu0
        %v842 = vadd.f32 0.0, %v841
        %v843 = vpop.f32.mrb[0].mxu0
        %v844 = vadd.f32 0.0, %v843
        %845 = vmatprep.mubr.bf16.mxu0 0
        %846 = vmatmul.mubr.bf16.gmra.mrb[0].mxu0 %v682
        %v847 = vpop.f32.mrb[0].mxu0
        %v848 = vadd.f32 0.0, %v847
        %v849 = vpop.f32.mrb[0].mxu0
        %v850 = vadd.f32 0.0, %v849
        %v851 = vpop.f32.mrb[0].mxu0
        %v852 = vadd.f32 0.0, %v851
        %v853 = vpop.f32.mrb[0].mxu0
        %v854 = vadd.f32 0.0, %v853
        %855 = vmatprep.mubr.bf16.mxu0 0
        %856 = vmatmul.mubr.bf16.gmra.mrb[0].mxu0 %v683
        %v857 = vpop.f32.mrb[0].mxu0
        %v858 = vadd.f32 0.0, %v857
        %v859 = vpop.f32.mrb[0].mxu0
        %v860 = vadd.f32 0.0, %v859
        %v861 = vpop.f32.mrb[0].mxu0
        %v862 = vadd.f32 0.0, %v861
        %v863 = vpop.f32.mrb[0].mxu0
        %v864 = vadd.f32 0.0, %v863
        %865 = vmatprep.mubr.bf16.mxu0 0
        %866 = vmatmul.mubr.bf16.gmra.mrb[0].mxu0 %v684
        %v867 = vpop.f32.mrb[0].mxu0
        %v868 = vadd.f32 0.0, %v867
        %v869 = vpop.f32.mrb[0].mxu0
        %v870 = vadd.f32 0.0, %v869
        %v871 = vpop.f32.mrb[0].mxu0
        %v872 = vadd.f32 0.0, %v871
        %v873 = vpop.f32.mrb[0].mxu0
        %v874 = vadd.f32 0.0, %v873
        %875 = vmatprep.mubr.bf16.mxu0 0
        %876 = vmatmul.mubr.bf16.gmra.mrb[0].mxu0 %v685
        %v877 = vpop.f32.mrb[0].mxu0
        %v878 = vadd.f32 0.0, %v877
        %v879 = vpop.f32.mrb[0].mxu0
        %v880 = vadd.f32 0.0, %v879
        %v881 = vpop.f32.mrb[0].mxu0
        %v882 = vadd.f32 0.0, %v881
        %v883 = vpop.f32.mrb[0].mxu0
        %v884 = vadd.f32 0.0, %v883
        %885 = vmatprep.mubr.bf16.mxu0 0
        %886 = vmatmul.mubr.bf16.gmra.mrb[0].mxu0 %v686
        %v887 = vpop.f32.mrb[0].mxu0
        %v888 = vadd.f32 0.0, %v887
        %v889 = vpop.f32.mrb[0].mxu0
        %v890 = vadd.f32 0.0, %v889
        %v891 = vpop.f32.mrb[0].mxu0
        %v892 = vadd.f32 0.0, %v891
        %v893 = vpop.f32.mrb[0].mxu0
        %v894 = vadd.f32 0.0, %v893
        %895 = vmatprep.mubr.bf16.mxu0 0
        %896 = vmatmul.mubr.bf16.gmra.mrb[0].mxu0 %v687
        %v897 = vpop.f32.mrb[0].mxu0
        %v898 = vadd.f32 0.0, %v897
        %v899 = vpop.f32.mrb[0].mxu0
        %v900 = vadd.f32 0.0, %v899
        %v901 = vpop.f32.mrb[0].mxu0
        %v902 = vadd.f32 0.0, %v901
        %v903 = vpop.f32.mrb[0].mxu0
        %v904 = vadd.f32 0.0, %v903
        %905 = vmatprep.mubr.bf16.mxu0 0
        %906 = vmatmul.mubr.bf16.gmra.mrb[0].mxu0 %v688
        %v907 = vpop.f32.mrb[0].mxu0
        %v908 = vadd.f32 0.0, %v907
        %v909 = vpop.f32.mrb[0].mxu0
        %v910 = vadd.f32 0.0, %v909
        %v911 = vpop.f32.mrb[0].mxu0
        %v912 = vadd.f32 0.0, %v911
        %v913 = vpop.f32.mrb[0].mxu0
        %v914 = vadd.f32 0.0, %v913
        %915 = vmatprep.mubr.bf16.mxu0 0
        %916 = vmatmul.mubr.bf16.gmra.mrb[0].mxu0 %v689
        %v917 = vpop.f32.mrb[0].mxu0
        %v918 = vadd.f32 0.0, %v917
        %v919 = vpop.f32.mrb[0].mxu0
        %v920 = vadd.f32 0.0, %v919
        %v921 = vpop.f32.mrb[0].mxu0
        %v922 = vadd.f32 0.0, %v921
        %v923 = vpop.f32.mrb[0].mxu0
        %v924 = vadd.f32 0.0, %v923
        %925 = vmatprep.mubr.bf16.mxu0 0
        %926 = vmatmul.mubr.bf16.gmra.mrb[0].mxu0 %v690
        %v927 = vpop.f32.mrb[0].mxu0
        %v928 = vadd.f32 0.0, %v927
        %v929 = vpop.f32.mrb[0].mxu0
        %v930 = vadd.f32 0.0, %v929
        %v931 = vpop.f32.mrb[0].mxu0
        %v932 = vadd.f32 0.0, %v931
        %v933 = vpop.f32.mrb[0].mxu0
        %v934 = vadd.f32 0.0, %v933
        %935 = vdwg.mxu0
        %v936 = vld [vmem:[#allocation8] sm:$0x3]
        %v938 = vlaneseq
        %v939 = vshrl.u32 %v938, 7
        %v940 = vsub.s32 0, %v939
        %v941 = vrot.slane %v936, %v940
        %v942 = vlaneseq
        %v943 = vshrl.u32 %v942, 7
        %v944 = vsub.s32 1, %v943
        %v945 = vrot.slane %v936, %v944
        %v948 = vmul.f32 %v818, %v941
        %v949 = vmul.f32 %v820, %v945
        %v950 = vmul.f32 %v822, %v941
        %v951 = vmul.f32 %v824, %v945
        %v952 = vmul.f32 %v828, %v941
        %v953 = vmul.f32 %v830, %v945
        %v954 = vmul.f32 %v832, %v941
        %v955 = vmul.f32 %v834, %v945
        %v956 = vmul.f32 %v838, %v941
        %v957 = vmul.f32 %v840, %v945
        %v958 = vmul.f32 %v842, %v941
        %v959 = vmul.f32 %v844, %v945
        %v960 = vmul.f32 %v848, %v941
        %v961 = vmul.f32 %v850, %v945
        %v962 = vmul.f32 %v852, %v941
        %v963 = vmul.f32 %v854, %v945
        %v964 = vmul.f32 %v858, %v941
        %v965 = vmul.f32 %v860, %v945
        %v966 = vmul.f32 %v862, %v941
        %v967 = vmul.f32 %v864, %v945
        %v968 = vmul.f32 %v868, %v941
        %v969 = vmul.f32 %v870, %v945
        %v970 = vmul.f32 %v872, %v941
        %v971 = vmul.f32 %v874, %v945
        %v972 = vmul.f32 %v878, %v941
        %v973 = vmul.f32 %v880, %v945
        %v974 = vmul.f32 %v882, %v941
        %v975 = vmul.f32 %v884, %v945
        %v976 = vmul.f32 %v888, %v941
        %v977 = vmul.f32 %v890, %v945
        %v978 = vmul.f32 %v892, %v941
        %v979 = vmul.f32 %v894, %v945
        %v980 = vmul.f32 %v898, %v941
        %v981 = vmul.f32 %v900, %v945
        %v982 = vmul.f32 %v902, %v941
        %v983 = vmul.f32 %v904, %v945
        %v984 = vmul.f32 %v908, %v941
        %v985 = vmul.f32 %v910, %v945
        %v986 = vmul.f32 %v912, %v941
        %v987 = vmul.f32 %v914, %v945
        %v988 = vmul.f32 %v918, %v941
        %v989 = vmul.f32 %v920, %v945
        %v990 = vmul.f32 %v922, %v941
        %v991 = vmul.f32 %v924, %v945
        %v992 = vmul.f32 %v928, %v941
        %v993 = vmul.f32 %v930, %v945
        %v994 = vmul.f32 %v932, %v941
        %v995 = vmul.f32 %v934, %v945
        %v996 = vld [vmem:[#allocation9] sm:$0x3]
        %v998 = vlaneseq
        %v999 = vshrl.u32 %v998, 7
        %v1000 = vsub.s32 0, %v999
        %v1001 = vrot.slane %v996, %v1000
        %v1002 = vlaneseq
        %v1003 = vshrl.u32 %v1002, 7
        %v1004 = vsub.s32 1, %v1003
        %v1005 = vrot.slane %v996, %v1004
        %v1008 = vadd.f32 %v948, %v1001
        %v1009 = vadd.f32 %v949, %v1005
        %v1010 = vadd.f32 %v950, %v1001
        %v1011 = vadd.f32 %v951, %v1005
        %v1012 = vadd.f32 %v952, %v1001
        %v1013 = vadd.f32 %v953, %v1005
        %v1014 = vadd.f32 %v954, %v1001
        %v1015 = vadd.f32 %v955, %v1005
        %v1016 = vadd.f32 %v956, %v1001
        %v1017 = vadd.f32 %v957, %v1005
        %v1018 = vadd.f32 %v958, %v1001
        %v1019 = vadd.f32 %v959, %v1005
        %v1020 = vadd.f32 %v960, %v1001
        %v1021 = vadd.f32 %v961, %v1005
        %v1022 = vadd.f32 %v962, %v1001
        %v1023 = vadd.f32 %v963, %v1005
        %v1024 = vadd.f32 %v964, %v1001
        %v1025 = vadd.f32 %v965, %v1005
        %v1026 = vadd.f32 %v966, %v1001
        %v1027 = vadd.f32 %v967, %v1005
        %v1028 = vadd.f32 %v968, %v1001
        %v1029 = vadd.f32 %v969, %v1005
        %v1030 = vadd.f32 %v970, %v1001
        %v1031 = vadd.f32 %v971, %v1005
        %v1032 = vadd.f32 %v972, %v1001
        %v1033 = vadd.f32 %v973, %v1005
        %v1034 = vadd.f32 %v974, %v1001
        %v1035 = vadd.f32 %v975, %v1005
        %v1036 = vadd.f32 %v976, %v1001
        %v1037 = vadd.f32 %v977, %v1005
        %v1038 = vadd.f32 %v978, %v1001
        %v1039 = vadd.f32 %v979, %v1005
        %v1040 = vadd.f32 %v980, %v1001
        %v1041 = vadd.f32 %v981, %v1005
        %v1042 = vadd.f32 %v982, %v1001
        %v1043 = vadd.f32 %v983, %v1005
        %v1044 = vadd.f32 %v984, %v1001
        %v1045 = vadd.f32 %v985, %v1005
        %v1046 = vadd.f32 %v986, %v1001
        %v1047 = vadd.f32 %v987, %v1005
        %v1048 = vadd.f32 %v988, %v1001
        %v1049 = vadd.f32 %v989, %v1005
        %v1050 = vadd.f32 %v990, %v1001
        %v1051 = vadd.f32 %v991, %v1005
        %v1052 = vadd.f32 %v992, %v1001
        %v1053 = vadd.f32 %v993, %v1005
        %v1054 = vadd.f32 %v994, %v1001
        %v1055 = vadd.f32 %v995, %v1005
        %v1056 = vmax.f32 %v1008, 0.0
        %v1057 = vmax.f32 %v1009, 0.0
        %v1058 = vmax.f32 %v1010, 0.0
        %v1059 = vmax.f32 %v1011, 0.0
        %v1060 = vmax.f32 %v1012, 0.0
        %v1061 = vmax.f32 %v1013, 0.0
        %v1062 = vmax.f32 %v1014, 0.0
        %v1063 = vmax.f32 %v1015, 0.0
        %v1064 = vmax.f32 %v1016, 0.0
        %v1065 = vmax.f32 %v1017, 0.0
        %v1066 = vmax.f32 %v1018, 0.0
        %v1067 = vmax.f32 %v1019, 0.0
        %v1068 = vmax.f32 %v1020, 0.0
        %v1069 = vmax.f32 %v1021, 0.0
        %v1070 = vmax.f32 %v1022, 0.0
        %v1071 = vmax.f32 %v1023, 0.0
        %v1072 = vmax.f32 %v1024, 0.0
        %v1073 = vmax.f32 %v1025, 0.0
        %v1074 = vmax.f32 %v1026, 0.0
        %v1075 = vmax.f32 %v1027, 0.0
        %v1076 = vmax.f32 %v1028, 0.0
        %v1077 = vmax.f32 %v1029, 0.0
        %v1078 = vmax.f32 %v1030, 0.0
        %v1079 = vmax.f32 %v1031, 0.0
        %v1080 = vmax.f32 %v1032, 0.0
        %v1081 = vmax.f32 %v1033, 0.0
        %v1082 = vmax.f32 %v1034, 0.0
        %v1083 = vmax.f32 %v1035, 0.0
        %v1084 = vmax.f32 %v1036, 0.0
        %v1085 = vmax.f32 %v1037, 0.0
        %v1086 = vmax.f32 %v1038, 0.0
        %v1087 = vmax.f32 %v1039, 0.0
        %v1088 = vmax.f32 %v1040, 0.0
        %v1089 = vmax.f32 %v1041, 0.0
        %v1090 = vmax.f32 %v1042, 0.0
        %v1091 = vmax.f32 %v1043, 0.0
        %v1092 = vmax.f32 %v1044, 0.0
        %v1093 = vmax.f32 %v1045, 0.0
        %v1094 = vmax.f32 %v1046, 0.0
        %v1095 = vmax.f32 %v1047, 0.0
        %v1096 = vmax.f32 %v1048, 0.0
        %v1097 = vmax.f32 %v1049, 0.0
        %v1098 = vmax.f32 %v1050, 0.0
        %v1099 = vmax.f32 %v1051, 0.0
        %v1100 = vmax.f32 %v1052, 0.0
        %v1101 = vmax.f32 %v1053, 0.0
        %v1102 = vmax.f32 %v1054, 0.0
        %v1103 = vmax.f32 %v1055, 0.0
        %v1104 = vmin.f32 %v1056, 6.0
        %v1105 = vmin.f32 %v1057, 6.0
        %v1106 = vmin.f32 %v1058, 6.0
        %v1107 = vmin.f32 %v1059, 6.0
        %v1108 = vmin.f32 %v1060, 6.0
        %v1109 = vmin.f32 %v1061, 6.0
        %v1110 = vmin.f32 %v1062, 6.0
        %v1111 = vmin.f32 %v1063, 6.0
        %v1112 = vmin.f32 %v1064, 6.0
        %v1113 = vmin.f32 %v1065, 6.0
        %v1114 = vmin.f32 %v1066, 6.0
        %v1115 = vmin.f32 %v1067, 6.0
        %v1116 = vmin.f32 %v1068, 6.0
        %v1117 = vmin.f32 %v1069, 6.0
        %v1118 = vmin.f32 %v1070, 6.0
        %v1119 = vmin.f32 %v1071, 6.0
        %v1120 = vmin.f32 %v1072, 6.0
        %v1121 = vmin.f32 %v1073, 6.0
        %v1122 = vmin.f32 %v1074, 6.0
        %v1123 = vmin.f32 %v1075, 6.0
        %v1124 = vmin.f32 %v1076, 6.0
        %v1125 = vmin.f32 %v1077, 6.0
        %v1126 = vmin.f32 %v1078, 6.0
        %v1127 = vmin.f32 %v1079, 6.0
        %v1128 = vmin.f32 %v1080, 6.0
        %v1129 = vmin.f32 %v1081, 6.0
        %v1130 = vmin.f32 %v1082, 6.0
        %v1131 = vmin.f32 %v1083, 6.0
        %v1132 = vmin.f32 %v1084, 6.0
        %v1133 = vmin.f32 %v1085, 6.0
        %v1134 = vmin.f32 %v1086, 6.0
        %v1135 = vmin.f32 %v1087, 6.0
        %v1136 = vmin.f32 %v1088, 6.0
        %v1137 = vmin.f32 %v1089, 6.0
        %v1138 = vmin.f32 %v1090, 6.0
        %v1139 = vmin.f32 %v1091, 6.0
        %v1140 = vmin.f32 %v1092, 6.0
        %v1141 = vmin.f32 %v1093, 6.0
        %v1142 = vmin.f32 %v1094, 6.0
        %v1143 = vmin.f32 %v1095, 6.0
        %v1144 = vmin.f32 %v1096, 6.0
        %v1145 = vmin.f32 %v1097, 6.0
        %v1146 = vmin.f32 %v1098, 6.0
        %v1147 = vmin.f32 %v1099, 6.0
        %v1148 = vmin.f32 %v1100, 6.0
        %v1149 = vmin.f32 %v1101, 6.0
        %v1150 = vmin.f32 %v1102, 6.0
        %v1151 = vmin.f32 %v1103, 6.0
        %v1152 = vpack.c.bf16 %v1106, %v1104
        %v1153 = vpack.c.bf16 %v1107, %v1105
        %v1154 = vpack.c.bf16 %v1110, %v1108
        %v1155 = vpack.c.bf16 %v1111, %v1109
        %v1156 = vpack.c.bf16 %v1114, %v1112
        %v1157 = vpack.c.bf16 %v1115, %v1113
        %v1158 = vpack.c.bf16 %v1118, %v1116
        %v1159 = vpack.c.bf16 %v1119, %v1117
        %v1160 = vpack.c.bf16 %v1122, %v1120
        %v1161 = vpack.c.bf16 %v1123, %v1121
        %v1162 = vpack.c.bf16 %v1126, %v1124
        %v1163 = vpack.c.bf16 %v1127, %v1125
        %v1164 = vpack.c.bf16 %v1130, %v1128
        %v1165 = vpack.c.bf16 %v1131, %v1129
        %v1166 = vpack.c.bf16 %v1134, %v1132
        %v1167 = vpack.c.bf16 %v1135, %v1133
        %v1168 = vpack.c.bf16 %v1138, %v1136
        %v1169 = vpack.c.bf16 %v1139, %v1137
        %v1170 = vpack.c.bf16 %v1142, %v1140
        %v1171 = vpack.c.bf16 %v1143, %v1141
        %v1172 = vpack.c.bf16 %v1146, %v1144
        %v1173 = vpack.c.bf16 %v1147, %v1145
        %v1174 = vpack.c.bf16 %v1150, %v1148
        %v1175 = vpack.c.bf16 %v1151, %v1149
        %1176 = vst [vmem:[#allocation2] sm:$0xff] %v1152
        %1177 = vst [vmem:[#allocation2 + $0x8] sm:$0xff] %v1153
        %1178 = vst [vmem:[#allocation2 + $0x10] sm:$0xff] %v1154
        %1179 = vst [vmem:[#allocation2 + $0x18] sm:$0xff] %v1155
        %1180 = vst [vmem:[#allocation2 + $0x20] sm:$0xff] %v1156
        %1181 = vst [vmem:[#allocation2 + $0x28] sm:$0xff] %v1157
        %1182 = vst [vmem:[#allocation2 + $0x30] sm:$0xff] %v1158
        %1183 = vst [vmem:[#allocation2 + $0x38] sm:$0xff] %v1159
        %1184 = vst [vmem:[#allocation2 + $0x40] sm:$0xff] %v1160
        %1185 = vst [vmem:[#allocation2 + $0x48] sm:$0xff] %v1161
        %1186 = vst [vmem:[#allocation2 + $0x50] sm:$0xff] %v1162
        %1187 = vst [vmem:[#allocation2 + $0x58] sm:$0xff] %v1163
        %1188 = vst [vmem:[#allocation2 + $0x60] sm:$0xff] %v1164
        %1189 = vst [vmem:[#allocation2 + $0x68] sm:$0xff] %v1165
        %1190 = vst [vmem:[#allocation2 + $0x70] sm:$0xff] %v1166
        %1191 = vst [vmem:[#allocation2 + $0x78] sm:$0xff] %v1167
        %1192 = vst [vmem:[#allocation2 + $0x80] sm:$0xff] %v1168
        %1193 = vst [vmem:[#allocation2 + $0x88] sm:$0xff] %v1169
        %1194 = vst [vmem:[#allocation2 + $0x90] sm:$0xff] %v1170
        %1195 = vst [vmem:[#allocation2 + $0x98] sm:$0xff] %v1171
        %1196 = vst [vmem:[#allocation2 + $0xa0] sm:$0xff] %v1172
        %1197 = vst [vmem:[#allocation2 + $0xa8] sm:$0xff] %v1173
        %1198 = vst [vmem:[#allocation2 + $0xb0] sm:$0xff] %v1174
        %1199 = vst [vmem:[#allocation2 + $0xb8] sm:$0xff] %v1175
        %vm1200 = vcmask 1040384
        %vm1201 = vsmask.f32 256
        %vm1202 = vmand %vm1200, %vm1201
        %v1203 = vld [vmem:[#allocation2] sm:$0x1]
        %v1204 = vsel %vm1202, 0, %v1203
        %1205 = vst [vmem:[#allocation2] sm:$0x1] %v1204
        %v1206 = vld [vmem:[#allocation2 + $0x8] sm:$0x1]
        %v1207 = vsel %vm1202, 0, %v1206
        %1208 = vst [vmem:[#allocation2 + $0x8] sm:$0x1] %v1207
        %v1209 = vld [vmem:[#allocation2 + $0x20] sm:$0x1]
        %v1210 = vsel %vm1202, 0, %v1209
        %1211 = vst [vmem:[#allocation2 + $0x20] sm:$0x1] %v1210
        %v1212 = vld [vmem:[#allocation2 + $0x28] sm:$0x1]
        %v1213 = vsel %vm1202, 0, %v1212
        %1214 = vst [vmem:[#allocation2 + $0x28] sm:$0x1] %v1213
        %v1215 = vld [vmem:[#allocation2 + $0x40] sm:$0x1]
        %v1216 = vsel %vm1202, 0, %v1215
        %1217 = vst [vmem:[#allocation2 + $0x40] sm:$0x1] %v1216
        %v1218 = vld [vmem:[#allocation2 + $0x48] sm:$0x1]
        %v1219 = vsel %vm1202, 0, %v1218
        %1220 = vst [vmem:[#allocation2 + $0x48] sm:$0x1] %v1219
        %v1221 = vld [vmem:[#allocation2 + $0x60] sm:$0x1]
        %v1222 = vsel %vm1202, 0, %v1221
        %1223 = vst [vmem:[#allocation2 + $0x60] sm:$0x1] %v1222
        %v1224 = vld [vmem:[#allocation2 + $0x68] sm:$0x1]
        %v1225 = vsel %vm1202, 0, %v1224
        %1226 = vst [vmem:[#allocation2 + $0x68] sm:$0x1] %v1225
        %v1227 = vld [vmem:[#allocation2 + $0x80] sm:$0x1]
        %v1228 = vsel %vm1202, 0, %v1227
        %1229 = vst [vmem:[#allocation2 + $0x80] sm:$0x1] %v1228
        %v1230 = vld [vmem:[#allocation2 + $0x88] sm:$0x1]
        %v1231 = vsel %vm1202, 0, %v1230
        %1232 = vst [vmem:[#allocation2 + $0x88] sm:$0x1] %v1231
        %v1233 = vld [vmem:[#allocation2 + $0xa0] sm:$0x1]
        %v1234 = vsel %vm1202, 0, %v1233
        %1235 = vst [vmem:[#allocation2 + $0xa0] sm:$0x1] %v1234
        %v1236 = vld [vmem:[#allocation2 + $0xa8] sm:$0x1]
        %v1237 = vsel %vm1202, 0, %v1236
        %1238 = vst [vmem:[#allocation2 + $0xa8] sm:$0x1] %v1237
        %vm1239 = vsmask.f32 7938
        %vm1240 = vmand %vm1200, %vm1239
        %v1241 = vld [vmem:[#allocation2 + $0x10] sm:$0x1]
        %v1242 = vsel %vm1240, 0, %v1241
        %1243 = vst [vmem:[#allocation2 + $0x10] sm:$0x1] %v1242
        %v1244 = vld [vmem:[#allocation2 + $0x18] sm:$0x1]
        %v1245 = vsel %vm1240, 0, %v1244
        %1246 = vst [vmem:[#allocation2 + $0x18] sm:$0x1] %v1245
        %v1247 = vld [vmem:[#allocation2 + $0x30] sm:$0x1]
        %v1248 = vsel %vm1240, 0, %v1247
        %1249 = vst [vmem:[#allocation2 + $0x30] sm:$0x1] %v1248
        %v1250 = vld [vmem:[#allocation2 + $0x38] sm:$0x1]
        %v1251 = vsel %vm1240, 0, %v1250
        %1252 = vst [vmem:[#allocation2 + $0x38] sm:$0x1] %v1251
        %v1253 = vld [vmem:[#allocation2 + $0x50] sm:$0x1]
        %v1254 = vsel %vm1240, 0, %v1253
        %1255 = vst [vmem:[#allocation2 + $0x50] sm:$0x1] %v1254
        %v1256 = vld [vmem:[#allocation2 + $0x58] sm:$0x1]
        %v1257 = vsel %vm1240, 0, %v1256
        %1258 = vst [vmem:[#allocation2 + $0x58] sm:$0x1] %v1257
        %v1259 = vld [vmem:[#allocation2 + $0x70] sm:$0x1]
        %v1260 = vsel %vm1240, 0, %v1259
        %1261 = vst [vmem:[#allocation2 + $0x70] sm:$0x1] %v1260
        %v1262 = vld [vmem:[#allocation2 + $0x78] sm:$0x1]
        %v1263 = vsel %vm1240, 0, %v1262
        %1264 = vst [vmem:[#allocation2 + $0x78] sm:$0x1] %v1263
        %v1265 = vld [vmem:[#allocation2 + $0x90] sm:$0x1]
        %v1266 = vsel %vm1240, 0, %v1265
        %1267 = vst [vmem:[#allocation2 + $0x90] sm:$0x1] %v1266
        %v1268 = vld [vmem:[#allocation2 + $0x98] sm:$0x1]
        %v1269 = vsel %vm1240, 0, %v1268
        %1270 = vst [vmem:[#allocation2 + $0x98] sm:$0x1] %v1269
        %v1271 = vld [vmem:[#allocation2 + $0xb0] sm:$0x1]
        %v1272 = vsel %vm1240, 0, %v1271
        %1273 = vst [vmem:[#allocation2 + $0xb0] sm:$0x1] %v1272
        %v1274 = vld [vmem:[#allocation2 + $0xb8] sm:$0x1]
        %v1275 = vsel %vm1240, 0, %v1274
        %1276 = vst [vmem:[#allocation2 + $0xb8] sm:$0x1] %v1275
        %p1277 = scmp.eq.s32.totalorder %s38, 0
        // Predicated region
        $region109: #{inverted_residual_forward.1} parent=63 // pred_check
          %p1278 = pneg %p1277
        $region110: #{inverted_residual_forward.1} parent=63 // pred_check_branch
          %1280 = sbr.rel (%p1278) target = $region112
        $region111: #{inverted_residual_forward.1} parent=63 // pred_region
          %1281 = vst [vmem:[#allocation2] sm:$0xff] 0
          %1282 = vst [vmem:[#allocation2 + $0x8] sm:$0xff] 0
          %1283 = vst [vmem:[#allocation2 + $0x10] sm:$0xff] 0
          %1284 = vst [vmem:[#allocation2 + $0x18] sm:$0xff] 0
        $region112: #{inverted_residual_forward.1} parent=63 // pred_fallthru
          _
        %p1285 = scmp.eq.s32.totalorder %s38, 3
        // Predicated region
        $region113: #{inverted_residual_forward.1} parent=63 // pred_check
          %p1286 = pneg %p1285
        $region114: #{inverted_residual_forward.1} parent=63 // pred_check_branch
          %1288 = sbr.rel (%p1286) target = $region116
        $region115: #{inverted_residual_forward.1} parent=63 // pred_region
          %s1289 = scalar_lea.vmem [#allocation2], 160
          %1290 = vst [vmem:[%s1289] sm:$0xff] 0
          %1291 = vst [vmem:[%s1289 + $0x8] sm:$0xff] 0
          %1292 = vst [vmem:[%s1289 + $0x10] sm:$0xff] 0
          %1293 = vst [vmem:[%s1289 + $0x18] sm:$0xff] 0
        $region116: #{inverted_residual_forward.1} parent=63 // pred_fallthru
          _
        %v1294 = vld [vmem:[#allocation11] sm:$0xff]
        %v1295 = vld [vmem:[#allocation11 + $0x8] sm:$0xff]
        %v1296 = vld [vmem:[#allocation11 + $0x10] sm:$0x1]
        %v1297 = vld [vmem:[#allocation11 + $0x18] sm:$0x1]
        %v1298 = vld [vmem:[#allocation2] sm:$0xff]
        %v1299 = vld [vmem:[#allocation2 + $0x8] sm:$0xff]
        %v1300 = vld [vmem:[#allocation2 + $0x10] sm:$0xff]
        %v1301 = vld [vmem:[#allocation2 + $0x18] sm:$0xff]
        %v1302 = vld [vmem:[#allocation2 + $0x20] sm:$0xff]
        %v1303 = vld [vmem:[#allocation2 + $0x28] sm:$0xff]
        %v1304 = vld [vmem:[#allocation2 + $0x30] sm:$0xff]
        %v1305 = vld [vmem:[#allocation2 + $0x38] sm:$0xff]
        %v1306 = vld [vmem:[#allocation2 + $0x40] sm:$0xff]
        %v1307 = vld [vmem:[#allocation2 + $0x48] sm:$0xff]
        %v1308 = vld [vmem:[#allocation2 + $0x50] sm:$0xff]
        %v1309 = vld [vmem:[#allocation2 + $0x58] sm:$0xff]
        %v1310 = vld [vmem:[#allocation2 + $0x60] sm:$0xff]
        %v1311 = vld [vmem:[#allocation2 + $0x68] sm:$0xff]
        %v1312 = vld [vmem:[#allocation2 + $0x70] sm:$0xff]
        %v1313 = vld [vmem:[#allocation2 + $0x78] sm:$0xff]
        %v1314 = vunpack.c.l.bf16 %v1298
        %v1315 = vunpack.c.l.bf16 %v1299
        %v1316 = vunpack.c.h.bf16 %v1298
        %v1317 = vunpack.c.h.bf16 %v1299
        %v1318 = vunpack.c.l.bf16 %v1302
        %v1319 = vunpack.c.l.bf16 %v1303
        %v1320 = vunpack.c.h.bf16 %v1302
        %v1321 = vunpack.c.h.bf16 %v1303
        %v1322 = vunpack.c.l.bf16 %v1306
        %v1323 = vunpack.c.l.bf16 %v1307
        %v1324 = vunpack.c.h.bf16 %v1306
        %v1325 = vunpack.c.h.bf16 %v1307
        %v1326 = vunpack.c.l.bf16 %v1310
        %v1327 = vunpack.c.l.bf16 %v1311
        %v1328 = vunpack.c.h.bf16 %v1310
        %v1329 = vunpack.c.h.bf16 %v1311
        %v1330 = vlaneseq
        %v1331 = vshrl.u32 %v1330, 7
        %v1332 = vsub.s32 0, %v1331
        %v1333 = vrot.slane %v1294, %v1332
        %v1334 = vlaneseq
        %v1335 = vshrl.u32 %v1334, 7
        %v1336 = vsub.s32 0, %v1335
        %v1337 = vrot.slane %v1295, %v1336
        %v1338 = vmul.f32 %v1314, %v1333
        %v1339 = vmul.f32 %v1315, %v1337
        %v1340 = vmul.f32 %v1316, %v1333
        %v1341 = vmul.f32 %v1317, %v1337
        %v1342 = vmul.f32 %v1318, %v1333
        %v1343 = vmul.f32 %v1319, %v1337
        %v1344 = vmul.f32 %v1320, %v1333
        %v1345 = vmul.f32 %v1321, %v1337
        %v1346 = vmul.f32 %v1322, %v1333
        %v1347 = vmul.f32 %v1323, %v1337
        %v1348 = vmul.f32 %v1324, %v1333
        %v1349 = vmul.f32 %v1325, %v1337
        %v1350 = vmul.f32 %v1326, %v1333
        %v1351 = vmul.f32 %v1327, %v1337
        %v1352 = vmul.f32 %v1328, %v1333
        %v1353 = vmul.f32 %v1329, %v1337
        %v1354 = vadd.f32 %v1338, 0.0
        %v1355 = vadd.f32 %v1339, 0.0
        %v1356 = vadd.f32 %v1340, 0.0
        %v1357 = vadd.f32 %v1341, 0.0
        %v1358 = vadd.f32 %v1342, 0.0
        %v1359 = vadd.f32 %v1343, 0.0
        %v1360 = vadd.f32 %v1344, 0.0
        %v1361 = vadd.f32 %v1345, 0.0
        %v1362 = vadd.f32 %v1346, 0.0
        %v1363 = vadd.f32 %v1347, 0.0
        %v1364 = vadd.f32 %v1348, 0.0
        %v1365 = vadd.f32 %v1349, 0.0
        %v1366 = vadd.f32 %v1350, 0.0
        %v1367 = vadd.f32 %v1351, 0.0
        %v1368 = vadd.f32 %v1352, 0.0
        %v1369 = vadd.f32 %v1353, 0.0
        %v1370 = vunpack.c.l.bf16 %v1300
        %v1371 = vunpack.c.l.bf16 %v1301
        %v1372 = vunpack.c.l.bf16 %v1304
        %v1373 = vunpack.c.l.bf16 %v1305
        %v1374 = vunpack.c.l.bf16 %v1308
        %v1375 = vunpack.c.l.bf16 %v1309
        %v1376 = vunpack.c.l.bf16 %v1312
        %v1377 = vunpack.c.l.bf16 %v1313
        %v1378 = vlaneseq
        %v1379 = vshrl.u32 %v1378, 7
        %v1380 = vsub.s32 1, %v1379
        %v1381 = vrot.slane %v1294, %v1380
        %v1382 = vlaneseq
        %v1383 = vshrl.u32 %v1382, 7
        %v1384 = vsub.s32 1, %v1383
        %v1385 = vrot.slane %v1295, %v1384
        %v1386 = vmul.f32 %v1314, %v1381
        %v1387 = vmul.f32 %v1315, %v1385
        %v1388 = vmul.f32 %v1316, %v1381
        %v1389 = vmul.f32 %v1317, %v1385
        %v1390 = vmul.f32 %v1370, %v1381
        %v1391 = vmul.f32 %v1371, %v1385
        %v1392 = vmul.f32 %v1318, %v1381
        %v1393 = vmul.f32 %v1319, %v1385
        %v1394 = vmul.f32 %v1320, %v1381
        %v1395 = vmul.f32 %v1321, %v1385
        %v1396 = vmul.f32 %v1372, %v1381
        %v1397 = vmul.f32 %v1373, %v1385
        %v1398 = vmul.f32 %v1322, %v1381
        %v1399 = vmul.f32 %v1323, %v1385
        %v1400 = vmul.f32 %v1324, %v1381
        %v1401 = vmul.f32 %v1325, %v1385
        %v1402 = vmul.f32 %v1374, %v1381
        %v1403 = vmul.f32 %v1375, %v1385
        %v1404 = vmul.f32 %v1326, %v1381
        %v1405 = vmul.f32 %v1327, %v1385
        %v1406 = vmul.f32 %v1328, %v1381
        %v1407 = vmul.f32 %v1329, %v1385
        %v1408 = vmul.f32 %v1376, %v1381
        %v1409 = vmul.f32 %v1377, %v1385
        %vm1434 = vcmask 1046528
        %v1435 = vrot.slane %v1386, 1
        %v1436 = vrot.slane %v1388, 1
        %v1437 = vsel %vm1434, %v1435, %v1436
        %v1438 = vrot.slane %v1387, 1
        %v1439 = vrot.slane %v1389, 1
        %v1440 = vsel %vm1434, %v1438, %v1439
        %v1441 = vrot.slane %v1390, 1
        %v1442 = vsel %vm1434, %v1436, %v1441
        %v1443 = vrot.slane %v1391, 1
        %v1444 = vsel %vm1434, %v1439, %v1443
        %v1445 = vrot.slane %v1392, 1
        %v1446 = vrot.slane %v1394, 1
        %v1447 = vsel %vm1434, %v1445, %v1446
        %v1448 = vrot.slane %v1393, 1
        %v1449 = vrot.slane %v1395, 1
        %v1450 = vsel %vm1434, %v1448, %v1449
        %v1451 = vrot.slane %v1396, 1
        %v1452 = vsel %vm1434, %v1446, %v1451
        %v1453 = vrot.slane %v1397, 1
        %v1454 = vsel %vm1434, %v1449, %v1453
        %v1455 = vrot.slane %v1398, 1
        %v1456 = vrot.slane %v1400, 1
        %v1457 = vsel %vm1434, %v1455, %v1456
        %v1458 = vrot.slane %v1399, 1
        %v1459 = vrot.slane %v1401, 1
        %v1460 = vsel %vm1434, %v1458, %v1459
        %v1461 = vrot.slane %v1402, 1
        %v1462 = vsel %vm1434, %v1456, %v1461
        %v1463 = vrot.slane %v1403, 1
        %v1464 = vsel %vm1434, %v1459, %v1463
        %v1465 = vrot.slane %v1404, 1
        %v1466 = vrot.slane %v1406, 1
        %v1467 = vsel %vm1434, %v1465, %v1466
        %v1468 = vrot.slane %v1405, 1
        %v1469 = vrot.slane %v1407, 1
        %v1470 = vsel %vm1434, %v1468, %v1469
        %v1471 = vrot.slane %v1408, 1
        %v1472 = vsel %vm1434, %v1466, %v1471
        %v1473 = vrot.slane %v1409, 1
        %v1474 = vsel %vm1434, %v1469, %v1473
        %v1491 = vadd.f32 %v1354, %v1437
        %v1492 = vadd.f32 %v1355, %v1440
        %v1493 = vadd.f32 %v1356, %v1442
        %v1494 = vadd.f32 %v1357, %v1444
        %v1495 = vadd.f32 %v1358, %v1447
        %v1496 = vadd.f32 %v1359, %v1450
        %v1497 = vadd.f32 %v1360, %v1452
        %v1498 = vadd.f32 %v1361, %v1454
        %v1499 = vadd.f32 %v1362, %v1457
        %v1500 = vadd.f32 %v1363, %v1460
        %v1501 = vadd.f32 %v1364, %v1462
        %v1502 = vadd.f32 %v1365, %v1464
        %v1503 = vadd.f32 %v1366, %v1467
        %v1504 = vadd.f32 %v1367, %v1470
        %v1505 = vadd.f32 %v1368, %v1472
        %v1506 = vadd.f32 %v1369, %v1474
        %v1507 = vlaneseq
        %v1508 = vshrl.u32 %v1507, 7
        %v1509 = vsub.s32 2, %v1508
        %v1510 = vrot.slane %v1294, %v1509
        %v1511 = vlaneseq
        %v1512 = vshrl.u32 %v1511, 7
        %v1513 = vsub.s32 2, %v1512
        %v1514 = vrot.slane %v1295, %v1513
        %v1515 = vmul.f32 %v1314, %v1510
        %v1516 = vmul.f32 %v1315, %v1514
        %v1517 = vmul.f32 %v1316, %v1510
        %v1518 = vmul.f32 %v1317, %v1514
        %v1519 = vmul.f32 %v1370, %v1510
        %v1520 = vmul.f32 %v1371, %v1514
        %v1521 = vmul.f32 %v1318, %v1510
        %v1522 = vmul.f32 %v1319, %v1514
        %v1523 = vmul.f32 %v1320, %v1510
        %v1524 = vmul.f32 %v1321, %v1514
        %v1525 = vmul.f32 %v1372, %v1510
        %v1526 = vmul.f32 %v1373, %v1514
        %v1527 = vmul.f32 %v1322, %v1510
        %v1528 = vmul.f32 %v1323, %v1514
        %v1529 = vmul.f32 %v1324, %v1510
        %v1530 = vmul.f32 %v1325, %v1514
        %v1531 = vmul.f32 %v1374, %v1510
        %v1532 = vmul.f32 %v1375, %v1514
        %v1533 = vmul.f32 %v1326, %v1510
        %v1534 = vmul.f32 %v1327, %v1514
        %v1535 = vmul.f32 %v1328, %v1510
        %v1536 = vmul.f32 %v1329, %v1514
        %v1537 = vmul.f32 %v1376, %v1510
        %v1538 = vmul.f32 %v1377, %v1514
        %vm1563 = vcmask 1045504
        %v1564 = vrot.slane %v1515, 2
        %v1565 = vrot.slane %v1517, 2
        %v1566 = vsel %vm1563, %v1564, %v1565
        %v1567 = vrot.slane %v1516, 2
        %v1568 = vrot.slane %v1518, 2
        %v1569 = vsel %vm1563, %v1567, %v1568
        %v1570 = vrot.slane %v1519, 2
        %v1571 = vsel %vm1563, %v1565, %v1570
        %v1572 = vrot.slane %v1520, 2
        %v1573 = vsel %vm1563, %v1568, %v1572
        %v1574 = vrot.slane %v1521, 2
        %v1575 = vrot.slane %v1523, 2
        %v1576 = vsel %vm1563, %v1574, %v1575
        %v1577 = vrot.slane %v1522, 2
        %v1578 = vrot.slane %v1524, 2
        %v1579 = vsel %vm1563, %v1577, %v1578
        %v1580 = vrot.slane %v1525, 2
        %v1581 = vsel %vm1563, %v1575, %v1580
        %v1582 = vrot.slane %v1526, 2
        %v1583 = vsel %vm1563, %v1578, %v1582
        %v1584 = vrot.slane %v1527, 2
        %v1585 = vrot.slane %v1529, 2
        %v1586 = vsel %vm1563, %v1584, %v1585
        %v1587 = vrot.slane %v1528, 2
        %v1588 = vrot.slane %v1530, 2
        %v1589 = vsel %vm1563, %v1587, %v1588
        %v1590 = vrot.slane %v1531, 2
        %v1591 = vsel %vm1563, %v1585, %v1590
        %v1592 = vrot.slane %v1532, 2
        %v1593 = vsel %vm1563, %v1588, %v1592
        %v1594 = vrot.slane %v1533, 2
        %v1595 = vrot.slane %v1535, 2
        %v1596 = vsel %vm1563, %v1594, %v1595
        %v1597 = vrot.slane %v1534, 2
        %v1598 = vrot.slane %v1536, 2
        %v1599 = vsel %vm1563, %v1597, %v1598
        %v1600 = vrot.slane %v1537, 2
        %v1601 = vsel %vm1563, %v1595, %v1600
        %v1602 = vrot.slane %v1538, 2
        %v1603 = vsel %vm1563, %v1598, %v1602
        %v1620 = vadd.f32 %v1491, %v1566
        %v1621 = vadd.f32 %v1492, %v1569
        %v1622 = vadd.f32 %v1493, %v1571
        %v1623 = vadd.f32 %v1494, %v1573
        %v1624 = vadd.f32 %v1495, %v1576
        %v1625 = vadd.f32 %v1496, %v1579
        %v1626 = vadd.f32 %v1497, %v1581
        %v1627 = vadd.f32 %v1498, %v1583
        %v1628 = vadd.f32 %v1499, %v1586
        %v1629 = vadd.f32 %v1500, %v1589
        %v1630 = vadd.f32 %v1501, %v1591
        %v1631 = vadd.f32 %v1502, %v1593
        %v1632 = vadd.f32 %v1503, %v1596
        %v1633 = vadd.f32 %v1504, %v1599
        %v1634 = vadd.f32 %v1505, %v1601
        %v1635 = vadd.f32 %v1506, %v1603
        %s1636 = scalar_lea.vmem [#allocation2], 32
        %v1637 = vld [vmem:[%s1636] sm:$0xff]
        %v1638 = vld [vmem:[%s1636 + $0x8] sm:$0xff]
        %v1639 = vld [vmem:[%s1636 + $0x10] sm:$0xff]
        %v1640 = vld [vmem:[%s1636 + $0x18] sm:$0xff]
        %v1641 = vld [vmem:[%s1636 + $0x20] sm:$0xff]
        %v1642 = vld [vmem:[%s1636 + $0x28] sm:$0xff]
        %v1643 = vld [vmem:[%s1636 + $0x30] sm:$0xff]
        %v1644 = vld [vmem:[%s1636 + $0x38] sm:$0xff]
        %v1645 = vld [vmem:[%s1636 + $0x40] sm:$0xff]
        %v1646 = vld [vmem:[%s1636 + $0x48] sm:$0xff]
        %v1647 = vld [vmem:[%s1636 + $0x50] sm:$0xff]
        %v1648 = vld [vmem:[%s1636 + $0x58] sm:$0xff]
        %v1649 = vld [vmem:[%s1636 + $0x60] sm:$0xff]
        %v1650 = vld [vmem:[%s1636 + $0x68] sm:$0xff]
        %v1651 = vld [vmem:[%s1636 + $0x70] sm:$0xff]
        %v1652 = vld [vmem:[%s1636 + $0x78] sm:$0xff]
        %v1653 = vunpack.c.l.bf16 %v1637
        %v1654 = vunpack.c.l.bf16 %v1638
        %v1655 = vunpack.c.h.bf16 %v1637
        %v1656 = vunpack.c.h.bf16 %v1638
        %v1657 = vunpack.c.l.bf16 %v1641
        %v1658 = vunpack.c.l.bf16 %v1642
        %v1659 = vunpack.c.h.bf16 %v1641
        %v1660 = vunpack.c.h.bf16 %v1642
        %v1661 = vunpack.c.l.bf16 %v1645
        %v1662 = vunpack.c.l.bf16 %v1646
        %v1663 = vunpack.c.h.bf16 %v1645
        %v1664 = vunpack.c.h.bf16 %v1646
        %v1665 = vunpack.c.l.bf16 %v1649
        %v1666 = vunpack.c.l.bf16 %v1650
        %v1667 = vunpack.c.h.bf16 %v1649
        %v1668 = vunpack.c.h.bf16 %v1650
        %v1669 = vlaneseq
        %v1670 = vshrl.u32 %v1669, 7
        %v1671 = vsub.s32 3, %v1670
        %v1672 = vrot.slane %v1294, %v1671
        %v1673 = vlaneseq
        %v1674 = vshrl.u32 %v1673, 7
        %v1675 = vsub.s32 3, %v1674
        %v1676 = vrot.slane %v1295, %v1675
        %v1677 = vmul.f32 %v1653, %v1672
        %v1678 = vmul.f32 %v1654, %v1676
        %v1679 = vmul.f32 %v1655, %v1672
        %v1680 = vmul.f32 %v1656, %v1676
        %v1681 = vmul.f32 %v1657, %v1672
        %v1682 = vmul.f32 %v1658, %v1676
        %v1683 = vmul.f32 %v1659, %v1672
        %v1684 = vmul.f32 %v1660, %v1676
        %v1685 = vmul.f32 %v1661, %v1672
        %v1686 = vmul.f32 %v1662, %v1676
        %v1687 = vmul.f32 %v1663, %v1672
        %v1688 = vmul.f32 %v1664, %v1676
        %v1689 = vmul.f32 %v1665, %v1672
        %v1690 = vmul.f32 %v1666, %v1676
        %v1691 = vmul.f32 %v1667, %v1672
        %v1692 = vmul.f32 %v1668, %v1676
        %v1693 = vadd.f32 %v1620, %v1677
        %v1694 = vadd.f32 %v1621, %v1678
        %v1695 = vadd.f32 %v1622, %v1679
        %v1696 = vadd.f32 %v1623, %v1680
        %v1697 = vadd.f32 %v1624, %v1681
        %v1698 = vadd.f32 %v1625, %v1682
        %v1699 = vadd.f32 %v1626, %v1683
        %v1700 = vadd.f32 %v1627, %v1684
        %v1701 = vadd.f32 %v1628, %v1685
        %v1702 = vadd.f32 %v1629, %v1686
        %v1703 = vadd.f32 %v1630, %v1687
        %v1704 = vadd.f32 %v1631, %v1688
        %v1705 = vadd.f32 %v1632, %v1689
        %v1706 = vadd.f32 %v1633, %v1690
        %v1707 = vadd.f32 %v1634, %v1691
        %v1708 = vadd.f32 %v1635, %v1692
        %v1709 = vunpack.c.l.bf16 %v1639
        %v1710 = vunpack.c.l.bf16 %v1640
        %v1711 = vunpack.c.l.bf16 %v1643
        %v1712 = vunpack.c.l.bf16 %v1644
        %v1713 = vunpack.c.l.bf16 %v1647
        %v1714 = vunpack.c.l.bf16 %v1648
        %v1715 = vunpack.c.l.bf16 %v1651
        %v1716 = vunpack.c.l.bf16 %v1652
        %v1717 = vlaneseq
        %v1718 = vshrl.u32 %v1717, 7
        %v1719 = vsub.s32 4, %v1718
        %v1720 = vrot.slane %v1294, %v1719
        %v1721 = vlaneseq
        %v1722 = vshrl.u32 %v1721, 7
        %v1723 = vsub.s32 4, %v1722
        %v1724 = vrot.slane %v1295, %v1723
        %v1725 = vmul.f32 %v1653, %v1720
        %v1726 = vmul.f32 %v1654, %v1724
        %v1727 = vmul.f32 %v1655, %v1720
        %v1728 = vmul.f32 %v1656, %v1724
        %v1729 = vmul.f32 %v1709, %v1720
        %v1730 = vmul.f32 %v1710, %v1724
        %v1731 = vmul.f32 %v1657, %v1720
        %v1732 = vmul.f32 %v1658, %v1724
        %v1733 = vmul.f32 %v1659, %v1720
        %v1734 = vmul.f32 %v1660, %v1724
        %v1735 = vmul.f32 %v1711, %v1720
        %v1736 = vmul.f32 %v1712, %v1724
        %v1737 = vmul.f32 %v1661, %v1720
        %v1738 = vmul.f32 %v1662, %v1724
        %v1739 = vmul.f32 %v1663, %v1720
        %v1740 = vmul.f32 %v1664, %v1724
        %v1741 = vmul.f32 %v1713, %v1720
        %v1742 = vmul.f32 %v1714, %v1724
        %v1743 = vmul.f32 %v1665, %v1720
        %v1744 = vmul.f32 %v1666, %v1724
        %v1745 = vmul.f32 %v1667, %v1720
        %v1746 = vmul.f32 %v1668, %v1724
        %v1747 = vmul.f32 %v1715, %v1720
        %v1748 = vmul.f32 %v1716, %v1724
        %v1773 = vrot.slane %v1725, 1
        %v1774 = vrot.slane %v1727, 1
        %v1775 = vsel %vm1434, %v1773, %v1774
        %v1776 = vrot.slane %v1726, 1
        %v1777 = vrot.slane %v1728, 1
        %v1778 = vsel %vm1434, %v1776, %v1777
        %v1779 = vrot.slane %v1729, 1
        %v1780 = vsel %vm1434, %v1774, %v1779
        %v1781 = vrot.slane %v1730, 1
        %v1782 = vsel %vm1434, %v1777, %v1781
        %v1783 = vrot.slane %v1731, 1
        %v1784 = vrot.slane %v1733, 1
        %v1785 = vsel %vm1434, %v1783, %v1784
        %v1786 = vrot.slane %v1732, 1
        %v1787 = vrot.slane %v1734, 1
        %v1788 = vsel %vm1434, %v1786, %v1787
        %v1789 = vrot.slane %v1735, 1
        %v1790 = vsel %vm1434, %v1784, %v1789
        %v1791 = vrot.slane %v1736, 1
        %v1792 = vsel %vm1434, %v1787, %v1791
        %v1793 = vrot.slane %v1737, 1
        %v1794 = vrot.slane %v1739, 1
        %v1795 = vsel %vm1434, %v1793, %v1794
        %v1796 = vrot.slane %v1738, 1
        %v1797 = vrot.slane %v1740, 1
        %v1798 = vsel %vm1434, %v1796, %v1797
        %v1799 = vrot.slane %v1741, 1
        %v1800 = vsel %vm1434, %v1794, %v1799
        %v1801 = vrot.slane %v1742, 1
        %v1802 = vsel %vm1434, %v1797, %v1801
        %v1803 = vrot.slane %v1743, 1
        %v1804 = vrot.slane %v1745, 1
        %v1805 = vsel %vm1434, %v1803, %v1804
        %v1806 = vrot.slane %v1744, 1
        %v1807 = vrot.slane %v1746, 1
        %v1808 = vsel %vm1434, %v1806, %v1807
        %v1809 = vrot.slane %v1747, 1
        %v1810 = vsel %vm1434, %v1804, %v1809
        %v1811 = vrot.slane %v1748, 1
        %v1812 = vsel %vm1434, %v1807, %v1811
        %v1829 = vadd.f32 %v1693, %v1775
        %v1830 = vadd.f32 %v1694, %v1778
        %v1831 = vadd.f32 %v1695, %v1780
        %v1832 = vadd.f32 %v1696, %v1782
        %v1833 = vadd.f32 %v1697, %v1785
        %v1834 = vadd.f32 %v1698, %v1788
        %v1835 = vadd.f32 %v1699, %v1790
        %v1836 = vadd.f32 %v1700, %v1792
        %v1837 = vadd.f32 %v1701, %v1795
        %v1838 = vadd.f32 %v1702, %v1798
        %v1839 = vadd.f32 %v1703, %v1800
        %v1840 = vadd.f32 %v1704, %v1802
        %v1841 = vadd.f32 %v1705, %v1805
        %v1842 = vadd.f32 %v1706, %v1808
        %v1843 = vadd.f32 %v1707, %v1810
        %v1844 = vadd.f32 %v1708, %v1812
        %v1845 = vlaneseq
        %v1846 = vshrl.u32 %v1845, 7
        %v1847 = vsub.s32 5, %v1846
        %v1848 = vrot.slane %v1294, %v1847
        %v1849 = vlaneseq
        %v1850 = vshrl.u32 %v1849, 7
        %v1851 = vsub.s32 5, %v1850
        %v1852 = vrot.slane %v1295, %v1851
        %v1853 = vmul.f32 %v1653, %v1848
        %v1854 = vmul.f32 %v1654, %v1852
        %v1855 = vmul.f32 %v1655, %v1848
        %v1856 = vmul.f32 %v1656, %v1852
        %v1857 = vmul.f32 %v1709, %v1848
        %v1858 = vmul.f32 %v1710, %v1852
        %v1859 = vmul.f32 %v1657, %v1848
        %v1860 = vmul.f32 %v1658, %v1852
        %v1861 = vmul.f32 %v1659, %v1848
        %v1862 = vmul.f32 %v1660, %v1852
        %v1863 = vmul.f32 %v1711, %v1848
        %v1864 = vmul.f32 %v1712, %v1852
        %v1865 = vmul.f32 %v1661, %v1848
        %v1866 = vmul.f32 %v1662, %v1852
        %v1867 = vmul.f32 %v1663, %v1848
        %v1868 = vmul.f32 %v1664, %v1852
        %v1869 = vmul.f32 %v1713, %v1848
        %v1870 = vmul.f32 %v1714, %v1852
        %v1871 = vmul.f32 %v1665, %v1848
        %v1872 = vmul.f32 %v1666, %v1852
        %v1873 = vmul.f32 %v1667, %v1848
        %v1874 = vmul.f32 %v1668, %v1852
        %v1875 = vmul.f32 %v1715, %v1848
        %v1876 = vmul.f32 %v1716, %v1852
        %v1901 = vrot.slane %v1853, 2
        %v1902 = vrot.slane %v1855, 2
        %v1903 = vsel %vm1563, %v1901, %v1902
        %v1904 = vrot.slane %v1854, 2
        %v1905 = vrot.slane %v1856, 2
        %v1906 = vsel %vm1563, %v1904, %v1905
        %v1907 = vrot.slane %v1857, 2
        %v1908 = vsel %vm1563, %v1902, %v1907
        %v1909 = vrot.slane %v1858, 2
        %v1910 = vsel %vm1563, %v1905, %v1909
        %v1911 = vrot.slane %v1859, 2
        %v1912 = vrot.slane %v1861, 2
        %v1913 = vsel %vm1563, %v1911, %v1912
        %v1914 = vrot.slane %v1860, 2
        %v1915 = vrot.slane %v1862, 2
        %v1916 = vsel %vm1563, %v1914, %v1915
        %v1917 = vrot.slane %v1863, 2
        %v1918 = vsel %vm1563, %v1912, %v1917
        %v1919 = vrot.slane %v1864, 2
        %v1920 = vsel %vm1563, %v1915, %v1919
        %v1921 = vrot.slane %v1865, 2
        %v1922 = vrot.slane %v1867, 2
        %v1923 = vsel %vm1563, %v1921, %v1922
        %v1924 = vrot.slane %v1866, 2
        %v1925 = vrot.slane %v1868, 2
        %v1926 = vsel %vm1563, %v1924, %v1925
        %v1927 = vrot.slane %v1869, 2
        %v1928 = vsel %vm1563, %v1922, %v1927
        %v1929 = vrot.slane %v1870, 2
        %v1930 = vsel %vm1563, %v1925, %v1929
        %v1931 = vrot.slane %v1871, 2
        %v1932 = vrot.slane %v1873, 2
        %v1933 = vsel %vm1563, %v1931, %v1932
        %v1934 = vrot.slane %v1872, 2
        %v1935 = vrot.slane %v1874, 2
        %v1936 = vsel %vm1563, %v1934, %v1935
        %v1937 = vrot.slane %v1875, 2
        %v1938 = vsel %vm1563, %v1932, %v1937
        %v1939 = vrot.slane %v1876, 2
        %v1940 = vsel %vm1563, %v1935, %v1939
        %v1957 = vadd.f32 %v1829, %v1903
        %v1958 = vadd.f32 %v1830, %v1906
        %v1959 = vadd.f32 %v1831, %v1908
        %v1960 = vadd.f32 %v1832, %v1910
        %v1961 = vadd.f32 %v1833, %v1913
        %v1962 = vadd.f32 %v1834, %v1916
        %v1963 = vadd.f32 %v1835, %v1918
        %v1964 = vadd.f32 %v1836, %v1920
        %v1965 = vadd.f32 %v1837, %v1923
        %v1966 = vadd.f32 %v1838, %v1926
        %v1967 = vadd.f32 %v1839, %v1928
        %v1968 = vadd.f32 %v1840, %v1930
        %v1969 = vadd.f32 %v1841, %v1933
        %v1970 = vadd.f32 %v1842, %v1936
        %v1971 = vadd.f32 %v1843, %v1938
        %v1972 = vadd.f32 %v1844, %v1940
        %s1973 = scalar_lea.vmem [#allocation2], 64
        %v1974 = vld [vmem:[%s1973] sm:$0xff]
        %v1975 = vld [vmem:[%s1973 + $0x8] sm:$0xff]
        %v1976 = vld [vmem:[%s1973 + $0x10] sm:$0xff]
        %v1977 = vld [vmem:[%s1973 + $0x18] sm:$0xff]
        %v1978 = vld [vmem:[%s1973 + $0x20] sm:$0xff]
        %v1979 = vld [vmem:[%s1973 + $0x28] sm:$0xff]
        %v1980 = vld [vmem:[%s1973 + $0x30] sm:$0xff]
        %v1981 = vld [vmem:[%s1973 + $0x38] sm:$0xff]
        %v1982 = vld [vmem:[%s1973 + $0x40] sm:$0xff]
        %v1983 = vld [vmem:[%s1973 + $0x48] sm:$0xff]
        %v1984 = vld [vmem:[%s1973 + $0x50] sm:$0xff]
        %v1985 = vld [vmem:[%s1973 + $0x58] sm:$0xff]
        %v1986 = vld [vmem:[%s1973 + $0x60] sm:$0xff]
        %v1987 = vld [vmem:[%s1973 + $0x68] sm:$0xff]
        %v1988 = vld [vmem:[%s1973 + $0x70] sm:$0xff]
        %v1989 = vld [vmem:[%s1973 + $0x78] sm:$0xff]
        %v1990 = vunpack.c.l.bf16 %v1974
        %v1991 = vunpack.c.l.bf16 %v1975
        %v1992 = vunpack.c.h.bf16 %v1974
        %v1993 = vunpack.c.h.bf16 %v1975
        %v1994 = vunpack.c.l.bf16 %v1978
        %v1995 = vunpack.c.l.bf16 %v1979
        %v1996 = vunpack.c.h.bf16 %v1978
        %v1997 = vunpack.c.h.bf16 %v1979
        %v1998 = vunpack.c.l.bf16 %v1982
        %v1999 = vunpack.c.l.bf16 %v1983
        %v2000 = vunpack.c.h.bf16 %v1982
        %v2001 = vunpack.c.h.bf16 %v1983
        %v2002 = vunpack.c.l.bf16 %v1986
        %v2003 = vunpack.c.l.bf16 %v1987
        %v2004 = vunpack.c.h.bf16 %v1986
        %v2005 = vunpack.c.h.bf16 %v1987
        %v2006 = vlaneseq
        %v2007 = vshrl.u32 %v2006, 7
        %v2008 = vsub.s32 6, %v2007
        %v2009 = vrot.slane %v1294, %v2008
        %v2010 = vlaneseq
        %v2011 = vshrl.u32 %v2010, 7
        %v2012 = vsub.s32 6, %v2011
        %v2013 = vrot.slane %v1295, %v2012
        %v2014 = vmul.f32 %v1990, %v2009
        %v2015 = vmul.f32 %v1991, %v2013
        %v2016 = vmul.f32 %v1992, %v2009
        %v2017 = vmul.f32 %v1993, %v2013
        %v2018 = vmul.f32 %v1994, %v2009
        %v2019 = vmul.f32 %v1995, %v2013
        %v2020 = vmul.f32 %v1996, %v2009
        %v2021 = vmul.f32 %v1997, %v2013
        %v2022 = vmul.f32 %v1998, %v2009
        %v2023 = vmul.f32 %v1999, %v2013
        %v2024 = vmul.f32 %v2000, %v2009
        %v2025 = vmul.f32 %v2001, %v2013
        %v2026 = vmul.f32 %v2002, %v2009
        %v2027 = vmul.f32 %v2003, %v2013
        %v2028 = vmul.f32 %v2004, %v2009
        %v2029 = vmul.f32 %v2005, %v2013
        %v2030 = vadd.f32 %v1957, %v2014
        %v2031 = vadd.f32 %v1958, %v2015
        %v2032 = vadd.f32 %v1959, %v2016
        %v2033 = vadd.f32 %v1960, %v2017
        %v2034 = vadd.f32 %v1961, %v2018
        %v2035 = vadd.f32 %v1962, %v2019
        %v2036 = vadd.f32 %v1963, %v2020
        %v2037 = vadd.f32 %v1964, %v2021
        %v2038 = vadd.f32 %v1965, %v2022
        %v2039 = vadd.f32 %v1966, %v2023
        %v2040 = vadd.f32 %v1967, %v2024
        %v2041 = vadd.f32 %v1968, %v2025
        %v2042 = vadd.f32 %v1969, %v2026
        %v2043 = vadd.f32 %v1970, %v2027
        %v2044 = vadd.f32 %v1971, %v2028
        %v2045 = vadd.f32 %v1972, %v2029
        %v2046 = vunpack.c.l.bf16 %v1976
        %v2047 = vunpack.c.l.bf16 %v1977
        %v2048 = vunpack.c.l.bf16 %v1980
        %v2049 = vunpack.c.l.bf16 %v1981
        %v2050 = vunpack.c.l.bf16 %v1984
        %v2051 = vunpack.c.l.bf16 %v1985
        %v2052 = vunpack.c.l.bf16 %v1988
        %v2053 = vunpack.c.l.bf16 %v1989
        %v2054 = vlaneseq
        %v2055 = vshrl.u32 %v2054, 7
        %v2056 = vsub.s32 7, %v2055
        %v2057 = vrot.slane %v1294, %v2056
        %v2058 = vlaneseq
        %v2059 = vshrl.u32 %v2058, 7
        %v2060 = vsub.s32 7, %v2059
        %v2061 = vrot.slane %v1295, %v2060
        %v2062 = vmul.f32 %v1990, %v2057
        %v2063 = vmul.f32 %v1991, %v2061
        %v2064 = vmul.f32 %v1992, %v2057
        %v2065 = vmul.f32 %v1993, %v2061
        %v2066 = vmul.f32 %v2046, %v2057
        %v2067 = vmul.f32 %v2047, %v2061
        %v2068 = vmul.f32 %v1994, %v2057
        %v2069 = vmul.f32 %v1995, %v2061
        %v2070 = vmul.f32 %v1996, %v2057
        %v2071 = vmul.f32 %v1997, %v2061
        %v2072 = vmul.f32 %v2048, %v2057
        %v2073 = vmul.f32 %v2049, %v2061
        %v2074 = vmul.f32 %v1998, %v2057
        %v2075 = vmul.f32 %v1999, %v2061
        %v2076 = vmul.f32 %v2000, %v2057
        %v2077 = vmul.f32 %v2001, %v2061
        %v2078 = vmul.f32 %v2050, %v2057
        %v2079 = vmul.f32 %v2051, %v2061
        %v2080 = vmul.f32 %v2002, %v2057
        %v2081 = vmul.f32 %v2003, %v2061
        %v2082 = vmul.f32 %v2004, %v2057
        %v2083 = vmul.f32 %v2005, %v2061
        %v2084 = vmul.f32 %v2052, %v2057
        %v2085 = vmul.f32 %v2053, %v2061
        %v2110 = vrot.slane %v2062, 1
        %v2111 = vrot.slane %v2064, 1
        %v2112 = vsel %vm1434, %v2110, %v2111
        %v2113 = vrot.slane %v2063, 1
        %v2114 = vrot.slane %v2065, 1
        %v2115 = vsel %vm1434, %v2113, %v2114
        %v2116 = vrot.slane %v2066, 1
        %v2117 = vsel %vm1434, %v2111, %v2116
        %v2118 = vrot.slane %v2067, 1
        %v2119 = vsel %vm1434, %v2114, %v2118
        %v2120 = vrot.slane %v2068, 1
        %v2121 = vrot.slane %v2070, 1
        %v2122 = vsel %vm1434, %v2120, %v2121
        %v2123 = vrot.slane %v2069, 1
        %v2124 = vrot.slane %v2071, 1
        %v2125 = vsel %vm1434, %v2123, %v2124
        %v2126 = vrot.slane %v2072, 1
        %v2127 = vsel %vm1434, %v2121, %v2126
        %v2128 = vrot.slane %v2073, 1
        %v2129 = vsel %vm1434, %v2124, %v2128
        %v2130 = vrot.slane %v2074, 1
        %v2131 = vrot.slane %v2076, 1
        %v2132 = vsel %vm1434, %v2130, %v2131
        %v2133 = vrot.slane %v2075, 1
        %v2134 = vrot.slane %v2077, 1
        %v2135 = vsel %vm1434, %v2133, %v2134
        %v2136 = vrot.slane %v2078, 1
        %v2137 = vsel %vm1434, %v2131, %v2136
        %v2138 = vrot.slane %v2079, 1
        %v2139 = vsel %vm1434, %v2134, %v2138
        %v2140 = vrot.slane %v2080, 1
        %v2141 = vrot.slane %v2082, 1
        %v2142 = vsel %vm1434, %v2140, %v2141
        %v2143 = vrot.slane %v2081, 1
        %v2144 = vrot.slane %v2083, 1
        %v2145 = vsel %vm1434, %v2143, %v2144
        %v2146 = vrot.slane %v2084, 1
        %v2147 = vsel %vm1434, %v2141, %v2146
        %v2148 = vrot.slane %v2085, 1
        %v2149 = vsel %vm1434, %v2144, %v2148
        %v2166 = vadd.f32 %v2030, %v2112
        %v2167 = vadd.f32 %v2031, %v2115
        %v2168 = vadd.f32 %v2032, %v2117
        %v2169 = vadd.f32 %v2033, %v2119
        %v2170 = vadd.f32 %v2034, %v2122
        %v2171 = vadd.f32 %v2035, %v2125
        %v2172 = vadd.f32 %v2036, %v2127
        %v2173 = vadd.f32 %v2037, %v2129
        %v2174 = vadd.f32 %v2038, %v2132
        %v2175 = vadd.f32 %v2039, %v2135
        %v2176 = vadd.f32 %v2040, %v2137
        %v2177 = vadd.f32 %v2041, %v2139
        %v2178 = vadd.f32 %v2042, %v2142
        %v2179 = vadd.f32 %v2043, %v2145
        %v2180 = vadd.f32 %v2044, %v2147
        %v2181 = vadd.f32 %v2045, %v2149
        %v2182 = vlaneseq
        %v2183 = vshrl.u32 %v2182, 7
        %v2184 = vsub.s32 0, %v2183
        %v2185 = vrot.slane %v1296, %v2184
        %v2186 = vlaneseq
        %v2187 = vshrl.u32 %v2186, 7
        %v2188 = vsub.s32 0, %v2187
        %v2189 = vrot.slane %v1297, %v2188
        %v2190 = vmul.f32 %v1990, %v2185
        %v2191 = vmul.f32 %v1991, %v2189
        %v2192 = vmul.f32 %v1992, %v2185
        %v2193 = vmul.f32 %v1993, %v2189
        %v2194 = vmul.f32 %v2046, %v2185
        %v2195 = vmul.f32 %v2047, %v2189
        %v2196 = vmul.f32 %v1994, %v2185
        %v2197 = vmul.f32 %v1995, %v2189
        %v2198 = vmul.f32 %v1996, %v2185
        %v2199 = vmul.f32 %v1997, %v2189
        %v2200 = vmul.f32 %v2048, %v2185
        %v2201 = vmul.f32 %v2049, %v2189
        %v2202 = vmul.f32 %v1998, %v2185
        %v2203 = vmul.f32 %v1999, %v2189
        %v2204 = vmul.f32 %v2000, %v2185
        %v2205 = vmul.f32 %v2001, %v2189
        %v2206 = vmul.f32 %v2050, %v2185
        %v2207 = vmul.f32 %v2051, %v2189
        %v2208 = vmul.f32 %v2002, %v2185
        %v2209 = vmul.f32 %v2003, %v2189
        %v2210 = vmul.f32 %v2004, %v2185
        %v2211 = vmul.f32 %v2005, %v2189
        %v2212 = vmul.f32 %v2052, %v2185
        %v2213 = vmul.f32 %v2053, %v2189
        %v2238 = vrot.slane %v2190, 2
        %v2239 = vrot.slane %v2192, 2
        %v2240 = vsel %vm1563, %v2238, %v2239
        %v2241 = vrot.slane %v2191, 2
        %v2242 = vrot.slane %v2193, 2
        %v2243 = vsel %vm1563, %v2241, %v2242
        %v2244 = vrot.slane %v2194, 2
        %v2245 = vsel %vm1563, %v2239, %v2244
        %v2246 = vrot.slane %v2195, 2
        %v2247 = vsel %vm1563, %v2242, %v2246
        %v2248 = vrot.slane %v2196, 2
        %v2249 = vrot.slane %v2198, 2
        %v2250 = vsel %vm1563, %v2248, %v2249
        %v2251 = vrot.slane %v2197, 2
        %v2252 = vrot.slane %v2199, 2
        %v2253 = vsel %vm1563, %v2251, %v2252
        %v2254 = vrot.slane %v2200, 2
        %v2255 = vsel %vm1563, %v2249, %v2254
        %v2256 = vrot.slane %v2201, 2
        %v2257 = vsel %vm1563, %v2252, %v2256
        %v2258 = vrot.slane %v2202, 2
        %v2259 = vrot.slane %v2204, 2
        %v2260 = vsel %vm1563, %v2258, %v2259
        %v2261 = vrot.slane %v2203, 2
        %v2262 = vrot.slane %v2205, 2
        %v2263 = vsel %vm1563, %v2261, %v2262
        %v2264 = vrot.slane %v2206, 2
        %v2265 = vsel %vm1563, %v2259, %v2264
        %v2266 = vrot.slane %v2207, 2
        %v2267 = vsel %vm1563, %v2262, %v2266
        %v2268 = vrot.slane %v2208, 2
        %v2269 = vrot.slane %v2210, 2
        %v2270 = vsel %vm1563, %v2268, %v2269
        %v2271 = vrot.slane %v2209, 2
        %v2272 = vrot.slane %v2211, 2
        %v2273 = vsel %vm1563, %v2271, %v2272
        %v2274 = vrot.slane %v2212, 2
        %v2275 = vsel %vm1563, %v2269, %v2274
        %v2276 = vrot.slane %v2213, 2
        %v2277 = vsel %vm1563, %v2272, %v2276
        %v2294 = vadd.f32 %v2166, %v2240
        %v2295 = vadd.f32 %v2167, %v2243
        %v2296 = vadd.f32 %v2168, %v2245
        %v2297 = vadd.f32 %v2169, %v2247
        %v2298 = vadd.f32 %v2170, %v2250
        %v2299 = vadd.f32 %v2171, %v2253
        %v2300 = vadd.f32 %v2172, %v2255
        %v2301 = vadd.f32 %v2173, %v2257
        %v2302 = vadd.f32 %v2174, %v2260
        %v2303 = vadd.f32 %v2175, %v2263
        %v2304 = vadd.f32 %v2176, %v2265
        %v2305 = vadd.f32 %v2177, %v2267
        %v2306 = vadd.f32 %v2178, %v2270
        %v2307 = vadd.f32 %v2179, %v2273
        %v2308 = vadd.f32 %v2180, %v2275
        %v2309 = vadd.f32 %v2181, %v2277
        %v2310 = vld [vmem:[#allocation12] sm:$0x3]
        %v2312 = vlaneseq
        %v2313 = vshrl.u32 %v2312, 7
        %v2314 = vsub.s32 0, %v2313
        %v2315 = vrot.slane %v2310, %v2314
        %v2316 = vlaneseq
        %v2317 = vshrl.u32 %v2316, 7
        %v2318 = vsub.s32 1, %v2317
        %v2319 = vrot.slane %v2310, %v2318
        %v2322 = vmul.f32 %v2294, %v2315
        %v2323 = vmul.f32 %v2295, %v2319
        %v2324 = vmul.f32 %v2296, %v2315
        %v2325 = vmul.f32 %v2297, %v2319
        %v2326 = vmul.f32 %v2298, %v2315
        %v2327 = vmul.f32 %v2299, %v2319
        %v2328 = vmul.f32 %v2300, %v2315
        %v2329 = vmul.f32 %v2301, %v2319
        %v2330 = vmul.f32 %v2302, %v2315
        %v2331 = vmul.f32 %v2303, %v2319
        %v2332 = vmul.f32 %v2304, %v2315
        %v2333 = vmul.f32 %v2305, %v2319
        %v2334 = vmul.f32 %v2306, %v2315
        %v2335 = vmul.f32 %v2307, %v2319
        %v2336 = vmul.f32 %v2308, %v2315
        %v2337 = vmul.f32 %v2309, %v2319
        %v2338 = vld [vmem:[#allocation14] sm:$0x3]
        %v2340 = vlaneseq
        %v2341 = vshrl.u32 %v2340, 7
        %v2342 = vsub.s32 0, %v2341
        %v2343 = vrot.slane %v2338, %v2342
        %v2344 = vlaneseq
        %v2345 = vshrl.u32 %v2344, 7
        %v2346 = vsub.s32 1, %v2345
        %v2347 = vrot.slane %v2338, %v2346
        %v2350 = vadd.f32 %v2322, %v2343
        %v2351 = vadd.f32 %v2323, %v2347
        %v2352 = vadd.f32 %v2324, %v2343
        %v2353 = vadd.f32 %v2325, %v2347
        %v2354 = vadd.f32 %v2326, %v2343
        %v2355 = vadd.f32 %v2327, %v2347
        %v2356 = vadd.f32 %v2328, %v2343
        %v2357 = vadd.f32 %v2329, %v2347
        %v2358 = vadd.f32 %v2330, %v2343
        %v2359 = vadd.f32 %v2331, %v2347
        %v2360 = vadd.f32 %v2332, %v2343
        %v2361 = vadd.f32 %v2333, %v2347
        %v2362 = vadd.f32 %v2334, %v2343
        %v2363 = vadd.f32 %v2335, %v2347
        %v2364 = vadd.f32 %v2336, %v2343
        %v2365 = vadd.f32 %v2337, %v2347
        %v2366 = vmax.f32 %v2350, 0.0
        %v2367 = vmax.f32 %v2351, 0.0
        %v2368 = vmax.f32 %v2352, 0.0
        %v2369 = vmax.f32 %v2353, 0.0
        %v2370 = vmax.f32 %v2354, 0.0
        %v2371 = vmax.f32 %v2355, 0.0
        %v2372 = vmax.f32 %v2356, 0.0
        %v2373 = vmax.f32 %v2357, 0.0
        %v2374 = vmax.f32 %v2358, 0.0
        %v2375 = vmax.f32 %v2359, 0.0
        %v2376 = vmax.f32 %v2360, 0.0
        %v2377 = vmax.f32 %v2361, 0.0
        %v2378 = vmax.f32 %v2362, 0.0
        %v2379 = vmax.f32 %v2363, 0.0
        %v2380 = vmax.f32 %v2364, 0.0
        %v2381 = vmax.f32 %v2365, 0.0
        %v2382 = vmin.f32 %v2366, 6.0
        %v2383 = vmin.f32 %v2367, 6.0
        %v2384 = vmin.f32 %v2368, 6.0
        %v2385 = vmin.f32 %v2369, 6.0
        %v2386 = vmin.f32 %v2370, 6.0
        %v2387 = vmin.f32 %v2371, 6.0
        %v2388 = vmin.f32 %v2372, 6.0
        %v2389 = vmin.f32 %v2373, 6.0
        %v2390 = vmin.f32 %v2374, 6.0
        %v2391 = vmin.f32 %v2375, 6.0
        %v2392 = vmin.f32 %v2376, 6.0
        %v2393 = vmin.f32 %v2377, 6.0
        %v2394 = vmin.f32 %v2378, 6.0
        %v2395 = vmin.f32 %v2379, 6.0
        %v2396 = vmin.f32 %v2380, 6.0
        %v2397 = vmin.f32 %v2381, 6.0
        %v2398 = vpack.c.bf16 %v2384, %v2382
        %v2399 = vpack.c.bf16 %v2385, %v2383
        %v2400 = vpack.c.bf16 %v2388, %v2386
        %v2401 = vpack.c.bf16 %v2389, %v2387
        %v2402 = vpack.c.bf16 %v2392, %v2390
        %v2403 = vpack.c.bf16 %v2393, %v2391
        %v2404 = vpack.c.bf16 %v2396, %v2394
        %v2405 = vpack.c.bf16 %v2397, %v2395
        %v2406 = vld [vmem:[#allocation15] sm:$0xf]
        %v2407 = vld [vmem:[#allocation15 + $0x4] sm:$0xf]
        %v2408 = vld [vmem:[#allocation15 + $0x8] sm:$0xf]
        %v2409 = vld [vmem:[#allocation15 + $0xc] sm:$0xf]
        %v2410 = vld [vmem:[#allocation15 + $0x10] sm:$0xf]
        %v2411 = vld [vmem:[#allocation15 + $0x14] sm:$0xf]
        %v2412 = vld [vmem:[#allocation15 + $0x18] sm:$0xf]
        %v2413 = vld [vmem:[#allocation15 + $0x1c] sm:$0xf]
        %v2414 = vld [vmem:[#allocation15 + $0x20] sm:$0xf]
        %v2415 = vld [vmem:[#allocation15 + $0x24] sm:$0xf]
        %v2416 = vld [vmem:[#allocation15 + $0x28] sm:$0xf]
        %v2417 = vld [vmem:[#allocation15 + $0x2c] sm:$0xf]
        %v2418 = vld [vmem:[#allocation15 + $0x30] sm:$0xf]
        %v2419 = vld [vmem:[#allocation15 + $0x34] sm:$0xf]
        %v2420 = vld [vmem:[#allocation15 + $0x38] sm:$0xf]
        %v2421 = vld [vmem:[#allocation15 + $0x3c] sm:$0xf]
        %v2422 = vld [vmem:[#allocation15 + $0x40] sm:$0xf]
        %v2423 = vld [vmem:[#allocation15 + $0x44] sm:$0xf]
        %v2424 = vld [vmem:[#allocation15 + $0x48] sm:$0xf]
        %v2425 = vld [vmem:[#allocation15 + $0x4c] sm:$0xf]
        %v2426 = vld [vmem:[#allocation15 + $0x50] sm:$0xf]
        %v2427 = vld [vmem:[#allocation15 + $0x54] sm:$0xf]
        %v2428 = vld [vmem:[#allocation15 + $0x58] sm:$0xf]
        %v2429 = vld [vmem:[#allocation15 + $0x5c] sm:$0xf]
        %v2430 = vld [vmem:[#allocation15 + $0x60] sm:$0xf]
        %v2431 = vld [vmem:[#allocation15 + $0x64] sm:$0xf]
        %v2432 = vld [vmem:[#allocation15 + $0x68] sm:$0xf]
        %v2433 = vld [vmem:[#allocation15 + $0x6c] sm:$0xf]
        %v2434 = vld [vmem:[#allocation15 + $0x70] sm:$0xf]
        %v2435 = vld [vmem:[#allocation15 + $0x74] sm:$0xf]
        %v2436 = vld [vmem:[#allocation15 + $0x78] sm:$0xf]
        %v2437 = vld [vmem:[#allocation15 + $0x7c] sm:$0xf]
        %v2470 = vunpack.c.l.b16 %v2406
        %v2471 = vunpack.c.l.b16 %v2407
        %v2472 = vunpack.c.l.b16 %v2408
        %v2473 = vunpack.c.l.b16 %v2409
        %v2474 = vunpack.c.l.b16 %v2410
        %v2475 = vunpack.c.l.b16 %v2411
        %v2476 = vunpack.c.l.b16 %v2412
        %v2477 = vunpack.c.l.b16 %v2413
        %v2478 = vunpack.c.l.b16 %v2414
        %v2479 = vunpack.c.l.b16 %v2415
        %v2480 = vunpack.c.l.b16 %v2416
        %v2481 = vunpack.c.l.b16 %v2417
        %v2482 = vunpack.c.l.b16 %v2418
        %v2483 = vunpack.c.l.b16 %v2419
        %v2484 = vunpack.c.l.b16 %v2420
        %v2485 = vunpack.c.l.b16 %v2421
        %v2486 = vunpack.c.l.b16 %v2422
        %v2487 = vunpack.c.l.b16 %v2423
        %v2488 = vunpack.c.l.b16 %v2424
        %v2489 = vunpack.c.l.b16 %v2425
        %v2490 = vunpack.c.l.b16 %v2426
        %v2491 = vunpack.c.l.b16 %v2427
        %v2492 = vunpack.c.l.b16 %v2428
        %v2493 = vunpack.c.l.b16 %v2429
        %v2494 = vunpack.c.l.b16 %v2430
        %v2495 = vunpack.c.l.b16 %v2431
        %v2496 = vunpack.c.l.b16 %v2432
        %v2497 = vunpack.c.l.b16 %v2433
        %v2498 = vunpack.c.l.b16 %v2434
        %v2499 = vunpack.c.l.b16 %v2435
        %v2500 = vunpack.c.l.b16 %v2436
        %v2501 = vunpack.c.l.b16 %v2437
        %v2502 = vpack.c.b16 %v2471, %v2470
        %v2503 = vpack.c.b16 %v2473, %v2472
        %v2504 = vpack.c.b16 %v2475, %v2474
        %v2505 = vpack.c.b16 %v2477, %v2476
        %v2506 = vpack.c.b16 %v2479, %v2478
        %v2507 = vpack.c.b16 %v2481, %v2480
        %v2508 = vpack.c.b16 %v2483, %v2482
        %v2509 = vpack.c.b16 %v2485, %v2484
        %v2510 = vpack.c.b16 %v2487, %v2486
        %v2511 = vpack.c.b16 %v2489, %v2488
        %v2512 = vpack.c.b16 %v2491, %v2490
        %v2513 = vpack.c.b16 %v2493, %v2492
        %v2514 = vpack.c.b16 %v2495, %v2494
        %v2515 = vpack.c.b16 %v2497, %v2496
        %v2516 = vpack.c.b16 %v2499, %v2498
        %v2517 = vpack.c.b16 %v2501, %v2500
        %2534 = vmatprep.subr.bf16.mxu0 0
        %2535 = vmatpush1.bf16.msra.mxu0 %v2502
        %2536 = vmatprep.subr.bf16.mxu0 0
        %2537 = vmatpush1.bf16.msra.mxu0 %v2503
        %2538 = vmatprep.subr.bf16.mxu0 0
        %2539 = vmatpush1.bf16.msra.mxu0 %v2504
        %2540 = vmatprep.subr.bf16.mxu0 0
        %2541 = vmatpush1.bf16.msra.mxu0 %v2505
        %2542 = vmatprep.subr.bf16.mxu0 0
        %2543 = vmatpush1.bf16.msra.mxu0 %v2506
        %2544 = vmatprep.subr.bf16.mxu0 0
        %2545 = vmatpush1.bf16.msra.mxu0 %v2507
        %2546 = vmatprep.subr.bf16.mxu0 0
        %2547 = vmatpush1.bf16.msra.mxu0 %v2508
        %2548 = vmatprep.subr.bf16.mxu0 0
        %2549 = vmatpush1.bf16.msra.mxu0 %v2509
        %2550 = vmatprep.subr.bf16.mxu0 0
        %2551 = vmatpush1.bf16.msra.mxu0 %v2510
        %2552 = vmatprep.subr.bf16.mxu0 0
        %2553 = vmatpush1.bf16.msra.mxu0 %v2511
        %2554 = vmatprep.subr.bf16.mxu0 0
        %2555 = vmatpush1.bf16.msra.mxu0 %v2512
        %2556 = vmatprep.subr.bf16.mxu0 0
        %2557 = vmatpush1.bf16.msra.mxu0 %v2513
        %2558 = vmatprep.subr.bf16.mxu0 0
        %2559 = vmatpush1.bf16.msra.mxu0 %v2514
        %2560 = vmatprep.subr.bf16.mxu0 0
        %2561 = vmatpush1.bf16.msra.mxu0 %v2515
        %2562 = vmatprep.subr.bf16.mxu0 0
        %2563 = vmatpush1.bf16.msra.mxu0 %v2516
        %2564 = vmatprep.subr.bf16.mxu0 0
        %2565 = vmatpush1.bf16.msra.mxu0 %v2517
        %2566 = vmatprep.mubr.bf16.mxu0 %v2399
        %2567 = vmatmul.mubr.bf16.gmra.mrb[0].mxu0 %v2398
        %v2568 = vpop.f32.mrb[0].mxu0
        %v2569 = vadd.f32 0.0, %v2568
        %v2570 = vpop.f32.mrb[0].mxu0
        %v2571 = vpop.f32.mrb[0].mxu0
        %v2572 = vadd.f32 0.0, %v2571
        %v2573 = vpop.f32.mrb[0].mxu0
        %2574 = vmatprep.mubr.bf16.mxu0 %v2401
        %2575 = vmatmul.mubr.bf16.gmra.mrb[0].mxu0 %v2400
        %v2576 = vpop.f32.mrb[0].mxu0
        %v2577 = vadd.f32 0.0, %v2576
        %v2578 = vpop.f32.mrb[0].mxu0
        %v2579 = vpop.f32.mrb[0].mxu0
        %v2580 = vadd.f32 0.0, %v2579
        %v2581 = vpop.f32.mrb[0].mxu0
        %2582 = vmatprep.mubr.bf16.mxu0 %v2403
        %2583 = vmatmul.mubr.bf16.gmra.mrb[0].mxu0 %v2402
        %v2584 = vpop.f32.mrb[0].mxu0
        %v2585 = vadd.f32 0.0, %v2584
        %v2586 = vpop.f32.mrb[0].mxu0
        %v2587 = vpop.f32.mrb[0].mxu0
        %v2588 = vadd.f32 0.0, %v2587
        %v2589 = vpop.f32.mrb[0].mxu0
        %2590 = vmatprep.mubr.bf16.mxu0 %v2405
        %2591 = vmatmul.mubr.bf16.gmra.mrb[0].mxu0 %v2404
        %v2592 = vpop.f32.mrb[0].mxu0
        %v2593 = vadd.f32 0.0, %v2592
        %v2594 = vpop.f32.mrb[0].mxu0
        %v2595 = vpop.f32.mrb[0].mxu0
        %v2596 = vadd.f32 0.0, %v2595
        %v2597 = vpop.f32.mrb[0].mxu0
        %2598 = vdwg.mxu0
        %v2599 = vld [vmem:[#allocation17] sm:$0x1]
        %v2601 = vlaneseq
        %v2602 = vshrl.u32 %v2601, 7
        %v2603 = vsub.s32 0, %v2602
        %v2604 = vrot.slane %v2599, %v2603
        %v2606 = vmul.f32 %v2569, %v2604
        %v2607 = vmul.f32 %v2572, %v2604
        %v2608 = vmul.f32 %v2577, %v2604
        %v2609 = vmul.f32 %v2580, %v2604
        %v2610 = vmul.f32 %v2585, %v2604
        %v2611 = vmul.f32 %v2588, %v2604
        %v2612 = vmul.f32 %v2593, %v2604
        %v2613 = vmul.f32 %v2596, %v2604
        %v2614 = vld [vmem:[#allocation18] sm:$0x1]
        %v2616 = vlaneseq
        %v2617 = vshrl.u32 %v2616, 7
        %v2618 = vsub.s32 0, %v2617
        %v2619 = vrot.slane %v2614, %v2618
        %v2621 = vadd.f32 %v2606, %v2619
        %v2622 = vadd.f32 %v2607, %v2619
        %v2623 = vadd.f32 %v2608, %v2619
        %v2624 = vadd.f32 %v2609, %v2619
        %v2625 = vadd.f32 %v2610, %v2619
        %v2626 = vadd.f32 %v2611, %v2619
        %v2627 = vadd.f32 %v2612, %v2619
        %v2628 = vadd.f32 %v2613, %v2619
        %v2629 = vld [vmem:[%s542] sm:$0xff]
        %v2630 = vld [vmem:[%s542 + $0x8] sm:$0xff]
        %v2631 = vld [vmem:[%s542 + $0x10] sm:$0xff]
        %v2632 = vld [vmem:[%s542 + $0x18] sm:$0xff]
        %v2633 = vld [vmem:[%s542 + $0x20] sm:$0xff]
        %v2634 = vld [vmem:[%s542 + $0x28] sm:$0xff]
        %v2635 = vld [vmem:[%s542 + $0x30] sm:$0xff]
        %v2636 = vld [vmem:[%s542 + $0x38] sm:$0xff]
        %v2637 = vadd.f32 %v2621, %v2629
        %v2638 = vadd.f32 %v2622, %v2630
        %v2639 = vadd.f32 %v2623, %v2631
        %v2640 = vadd.f32 %v2624, %v2632
        %v2641 = vadd.f32 %v2625, %v2633
        %v2642 = vadd.f32 %v2626, %v2634
        %v2643 = vadd.f32 %v2627, %v2635
        %v2644 = vadd.f32 %v2628, %v2636
        %2645 = vst [vmem:[%s585] sm:$0xff] %v2637
        %2646 = vst [vmem:[%s585 + $0x8] sm:$0xff] %v2638
        %2647 = vst [vmem:[%s585 + $0x10] sm:$0xff] %v2639
        %2648 = vst [vmem:[%s585 + $0x18] sm:$0xff] %v2640
        %2649 = vst [vmem:[%s585 + $0x20] sm:$0xff] %v2641
        %2650 = vst [vmem:[%s585 + $0x28] sm:$0xff] %v2642
        %2651 = vst [vmem:[%s585 + $0x30] sm:$0xff] %v2643
        %2652 = vst [vmem:[%s585 + $0x38] sm:$0xff] %v2644
        %s2653 = sand.u32 %s302, 1
        %s2654 = scalar_lea.sflag [#allocation5], %s2653
        %s2655 = sand.u32 %s302, 1
        %s2656 = smul.addr %s2655, 64
        %s2657 = scalar_lea.vmem [#allocation21], %s2656
        // Predicated region
        $region117: #{inverted_residual_forward.1} parent=63 // pred_check
          %p2658 = pneg %p312
        $region118: #{inverted_residual_forward.1} parent=63 // pred_check_branch
          %2660 = sbr.rel (%p2658) target = $region120
        $region119: #{inverted_residual_forward.1} parent=63 // pred_region
          %s2661 = smul.u32 4, %s38
          %s2663 = ssub.s32 1024, 1024
          %2664 = vsyncadd %s2654, %s2663
          %s2665 = smul.addr %s2661, 2
          %s2666 = smul.addr %s37, 32
          %s2667 = sadd.s32 %s2665, %s2666
          %s2668 = smul.addr %s2667, 128
          %s2669 = scalar_lea.hbm %s11, %s2668
          %s2670 = sshll.u32 %s2657, 4
          %s2671 = int_to_ptr.vmem [resolvable:$true] %s2670
          %2676 = dma.vmem_to_hbm [thread:$0]  %s2671, 1024, %s2669, %s2654, 128, 128, 8
        $region120: #{inverted_residual_forward.1} parent=63 // pred_fallthru
          _
      $region64: #{inverted_residual_forward.1} parent=5 // pred_fallthru
        _
      %p2677 = scmp.le.s32.totalorder 2, %s28
      // Predicated region
      $region121: #{inverted_residual_forward.1} parent=5 // pred_check
        %p2678 = pneg %p2677
      $region122: #{inverted_residual_forward.1} parent=5 // pred_check_branch
        %2680 = sbr.rel (%p2678) target = $region124
      $region123: #{inverted_residual_forward.1} parent=5 // pred_region
        %s2681 = ssub.s32 %s28, 2
        // Predicated region
        $region125: #{inverted_residual_forward.1} parent=123 // pred_check
          %p2682 = pneg %p318
        $region126: #{inverted_residual_forward.1} parent=123 // pred_check_branch
          %2684 = sbr.rel (%p2682) target = $region128
        $region127: #{inverted_residual_forward.1} parent=123 // pred_region
          %s2685 = sand.u32 %s303, 1
          %s2686 = scalar_lea.sflag [#allocation5], %s2685
          %s2687 = sand.u32 %s303, 1
          %s2688 = smul.addr %s2687, 64
          %s2689 = scalar_lea.vmem [#allocation21], %s2688
          %2690 = dma.done %s2686, 1024
        $region128: #{inverted_residual_forward.1} parent=123 // pred_fallthru
          _
      $region124: #{inverted_residual_forward.1} parent=5 // pred_fallthru
        _
    $region6: #{inverted_residual_forward.1} parent=1 // loop_footer
      %s32 = sadd.s32 1, %s28
    $region7: #{inverted_residual_forward.1} parent=1 // loop_footer_branch
      %27 = sbr.rel target = $region3
    $region8: #{inverted_residual_forward.1} parent=1 // loop_exit
      _
    %2691 = vsyncpa [#allocation4], 1
    %s2692 = scalar_lea.sflag [#allocation4], 1
    %2693 = vsyncpa %s2692, 1
    %2694 = vsyncpa [#allocation7], 1
    %2695 = vsyncpa [#allocation10], 1
    %2696 = vsyncpa [#allocation13], 1
    %2697 = vsyncpa [#allocation16], 1
    %2698 = vsyncpa [#allocation19], 1
    %2699 = vsyncpa [#allocation5], 1
    %s2700 = scalar_lea.sflag [#allocation5], 1
    %2701 = vsyncpa %s2700, 1

</llo_original>
